<compile_context>
chip_gen: v6e
topology: v6e:2x2x1
jax: 0.10.0
libtpu: 0.0.40
codegen_flags: <defaults>
</compile_context>

<pallas_src>
import functools

import jax
import jax.numpy as jnp
from jax.experimental import pallas as pl
from jax.experimental.pallas import tpu as pltpu


def vae_encoder_kernel(x_ref, w1t_ref, b1_ref, w2t_ref, b2_ref, out_ref,
                       *, latent_dim):
    # Layer 1, computed transposed so the batch tile lands on the lane axis:
    #   h_t[hidden, tb] = relu(W1^T @ x^T + b1)
    # dot_general with rhs contracting dim = 1 feeds the x tile transposed
    # straight into the MXU (no materialized transpose of the [tb, in] tile).
    h_t = jax.lax.dot_general(
        w1t_ref[...], x_ref[...],
        (((1,), (1,)), ((), ())),
        preferred_element_type=jnp.float32,
        precision=jax.lax.Precision.HIGHEST)
    h_t = jnp.maximum(h_t + b1_ref[...], 0.0)          # b1 is [hidden, 1]

    # Layer 2 (canonical MXU matmul): out_t[2*latent, tb] = W2^T @ h_t + b2
    out_t = jnp.dot(w2t_ref[...], h_t,
                    preferred_element_type=jnp.float32,
                    precision=jax.lax.Precision.HIGHEST)
    out_t = out_t + b2_ref[...]                          # b2 is [2*latent, 1]

    # Softplus on the whole slab (EUP), std half selected with a sublane mask.
    # max(x,0) + log1p(exp(-|x|)) == softplus(x), overflow-free.
    sp = jnp.maximum(out_t, 0.0) + jnp.log1p(jnp.exp(-jnp.abs(out_t)))
    row = jax.lax.broadcasted_iota(jnp.int32, out_t.shape, 0)
    out_ref[...] = jnp.where(row >= latent_dim, sp, out_t).astype(out_ref.dtype)


def _pick_batch_tile(B: int, block_b: int) -> int:
    """Batch tile size.

    The batch dim sits on the LANE axis of the transposed output block, so a
    tile that does not cover the whole batch must be a multiple of 128.  For
    large B we keep >= 2 grid steps so the "parallel" grid axis can shard
    across v7x's two TensorCores (no effect on v5e/v6e).
    """
    if B <= 256:
        return B                       # single tile; tb == B is always legal
    if B <= block_b and B % 128 != 0:
        return B                       # can't split cleanly on lanes -> 1 tile
    tb = min(block_b, B // 2)          # at least 2 grid steps
    tb = max(128, (tb // 128) * 128)   # lane-aligned
    return tb


def vae_encoder(x, w1, b1, w2, b2, latent_dim, *, block_b=4096):
    """x: [B, input_dim]; w1: [input_dim, hidden]; b1: [hidden];
    w2: [hidden, 2*latent]; b2: [2*latent]. Returns (mean, std), each [B, latent].

    Note: if B % tile != 0 the padded columns of the last output block contain
    garbage that is discarded on writeback (harmless, but pick B a multiple of
    the tile if NaN-checking tooling is in the loop)."""
    B, input_dim = x.shape
    hidden = w1.shape[1]
    two_latent = w2.shape[1]
    assert two_latent == 2 * latent_dim

    # Parameters are tiny: pre-transpose once in XLA so both in-kernel matmuls
    # stay in MXU-friendly orientation and biases broadcast along lanes.
    w1_t = w1.T                        # [hidden, input_dim]
    w2_t = w2.T                        # [2*latent, hidden]
    b1_c = b1.reshape(hidden, 1)
    b2_c = b2.reshape(two_latent, 1)

    tb = _pick_batch_tile(B, block_b)
    grid = (pl.cdiv(B, tb),)

    kernel = functools.partial(vae_encoder_kernel, latent_dim=latent_dim)

    flops = 2 * B * (input_dim * hidden + hidden * two_latent)
    transcendentals = 2 * B * two_latent            # exp + log1p over the slab
    bytes_accessed = 4 * (x.size + w1.size + b1.size + w2.size + b2.size
                          + B * two_latent)

    out_t = pl.pallas_call(
        kernel,
        out_shape=jax.ShapeDtypeStruct((two_latent, B), jnp.float32),
        grid=grid,
        in_specs=[
            pl.BlockSpec((tb, input_dim), lambda i: (i, 0)),       # x: tiled over batch
            pl.BlockSpec((hidden, input_dim), lambda i: (0, 0)),   # resident params
            pl.BlockSpec((hidden, 1), lambda i: (0, 0)),
            pl.BlockSpec((two_latent, hidden), lambda i: (0, 0)),
            pl.BlockSpec((two_latent, 1), lambda i: (0, 0)),
        ],
        # Lane-dense output: batch tile on the lane axis -> dense vst + dense DMA.
        out_specs=pl.BlockSpec((two_latent, tb), lambda i: (0, i)),
        compiler_params=pltpu.CompilerParams(
            dimension_semantics=("parallel",)),                    # megacore on v7x
        cost_estimate=pl.CostEstimate(
            flops=flops,
            transcendentals=transcendentals,
            bytes_accessed=bytes_accessed),
    )(x, w1_t, b1_c, w2_t, b2_c)

    # tensor_split(2, dim=-1) + transpose back to batch-major in the wrapper
    # (free XLA slicing; downstream code could also consume feature-major).
    mean = out_t[:latent_dim, :].T
    std = out_t[latent_dim:, :].T
    return mean, std


def reference_vae_encoder(x, w1, b1, w2, b2, latent_dim):
    hp = jax.lax.Precision.HIGHEST
    h = jnp.maximum(jnp.dot(x, w1, precision=hp) + b1, 0.0)
    out = jnp.dot(h, w2, precision=hp) + b2
    mean = out[:, :latent_dim]
    std = jax.nn.softplus(out[:, latent_dim:])
    return mean, std


if __name__ == "__main__":
    # Small shapes consistent with the module's forward; batch sized so the
    # grid has 2 steps (exercises pipelining + the "parallel" axis) and divides
    # the tile exactly.
    B, input_dim, hidden_dim, latent_dim = 512, 32, 64, 16

    key = jax.random.PRNGKey(0)
    kx, kw1, kb1, kw2, kb2 = jax.random.split(key, 5)

    x = jax.random.normal(kx, (B, input_dim), dtype=jnp.float32)

    # Deterministic parameters (Linear weights stored as [in, out]).
    w1 = jax.random.normal(kw1, (input_dim, hidden_dim), dtype=jnp.float32) * 0.1
    b1 = jax.random.normal(kb1, (hidden_dim,), dtype=jnp.float32) * 0.1
    w2 = jax.random.normal(kw2, (hidden_dim, 2 * latent_dim), dtype=jnp.float32) * 0.1
    b2 = jax.random.normal(kb2, (2 * latent_dim,), dtype=jnp.float32) * 0.1

    mean, std = vae_encoder(x, w1, b1, w2, b2, latent_dim, block_b=256)
    jax.block_until_ready((mean, std))

    # Correctness check vs. a pure-JAX reference.
    mean_ref, std_ref = reference_vae_encoder(x, w1, b1, w2, b2, latent_dim)
    assert jnp.allclose(mean, mean_ref, atol=1e-5, rtol=1e-5)
    assert jnp.allclose(std, std_ref, atol=1e-5, rtol=1e-5)
    assert bool(jnp.all(std > 0))

    print("KERNEL_OK")
</pallas_src>

<mosaic_0001>
module attributes {stable_mosaic.version = 11 : i64} {
  func.func @vae_encoder_kernel(%arg0: i32, %arg1: memref<256x32xf32, #tpu.memory_space<vmem>>, %arg2: memref<64x32xf32, #tpu.memory_space<vmem>>, %arg3: memref<64x1xf32, #tpu.memory_space<vmem>>, %arg4: memref<32x64xf32, #tpu.memory_space<vmem>>, %arg5: memref<32x1xf32, #tpu.memory_space<vmem>>, %arg6: memref<32x256xf32, #tpu.memory_space<vmem>>) attributes {dimension_semantics = [#tpu.dimension_semantics<parallel>], iteration_bounds = array<i64: 2>, scalar_prefetch = 0 : i64, scratch_operands = 0 : i64, tpu.core_type = #tpu.core_type<tc>, window_params = [{transform_indices = @transform_0, window_bounds = array<i64: 256, 32>}, {pipeline_mode = #tpu.pipeline_mode<synchronous>, transform_indices = @transform_1, window_bounds = array<i64: 64, 32>}, {pipeline_mode = #tpu.pipeline_mode<synchronous>, transform_indices = @transform_2, window_bounds = array<i64: 64, 1>}, {pipeline_mode = #tpu.pipeline_mode<synchronous>, transform_indices = @transform_3, window_bounds = array<i64: 32, 64>}, {pipeline_mode = #tpu.pipeline_mode<synchronous>, transform_indices = @transform_4, window_bounds = array<i64: 32, 1>}, {transform_indices = @transform_5, window_bounds = array<i64: 32, 256>}]} {
    %c0 = arith.constant 0 : index
    %c0_0 = arith.constant 0 : index
    %0 = vector.load %arg2[%c0, %c0_0] : memref<64x32xf32, #tpu.memory_space<vmem>>, vector<64x32xf32>
    %c0_1 = arith.constant 0 : index
    %c0_2 = arith.constant 0 : index
    %1 = vector.load %arg1[%c0_1, %c0_2] : memref<256x32xf32, #tpu.memory_space<vmem>>, vector<256x32xf32>
    %cst = arith.constant dense<0.000000e+00> : vector<64x256xf32>
    %2 = tpu.matmul %0, %1, %cst {dimension_numbers = #tpu.dot_dimension_numbers<[1], [1], [0], [0], [0, 0, 1, 0], [], []>, precision = #tpu.contract_precision<fp32>} : vector<64x32xf32>, vector<256x32xf32>, vector<64x256xf32> -> vector<64x256xf32>
    %c0_3 = arith.constant 0 : index
    %c0_4 = arith.constant 0 : index
    %3 = vector.load %arg3[%c0_3, %c0_4] : memref<64x1xf32, #tpu.memory_space<vmem>>, vector<64x1xf32>
    %4 = vector.broadcast %3 : vector<64x1xf32> to vector<64x256xf32>
    %5 = arith.addf %2, %4 : vector<64x256xf32>
    %cst_5 = arith.constant 0.000000e+00 : f32
    %6 = vector.broadcast %cst_5 : f32 to vector<64x256xf32>
    %7 = arith.maximumf %5, %6 : vector<64x256xf32>
    %c0_6 = arith.constant 0 : index
    %c0_7 = arith.constant 0 : index
    %8 = vector.load %arg4[%c0_6, %c0_7] : memref<32x64xf32, #tpu.memory_space<vmem>>, vector<32x64xf32>
    %cst_8 = arith.constant dense<0.000000e+00> : vector<32x256xf32>
    %9 = tpu.matmul %8, %7, %cst_8 {dimension_numbers = #tpu.dot_dimension_numbers<[1], [0], [0], [1], [0, 0, 1, 1], [], []>, precision = #tpu.contract_precision<fp32>} : vector<32x64xf32>, vector<64x256xf32>, vector<32x256xf32> -> vector<32x256xf32>
    %c0_9 = arith.constant 0 : index
    %c0_10 = arith.constant 0 : index
    %10 = vector.load %arg5[%c0_9, %c0_10] : memref<32x1xf32, #tpu.memory_space<vmem>>, vector<32x1xf32>
    %11 = vector.broadcast %10 : vector<32x1xf32> to vector<32x256xf32>
    %12 = arith.addf %9, %11 : vector<32x256xf32>
    %cst_11 = arith.constant 0.000000e+00 : f32
    %13 = vector.broadcast %cst_11 : f32 to vector<32x256xf32>
    %14 = arith.maximumf %12, %13 : vector<32x256xf32>
    %15 = math.absf %12 : vector<32x256xf32>
    %cst_12 = arith.constant 0.000000e+00 : f32
    %16 = vector.broadcast %cst_12 : f32 to vector<32x256xf32>
    %17 = arith.subf %16, %15 : vector<32x256xf32>
    %18 = math.exp %17 : vector<32x256xf32>
    %19 = math.log1p %18 : vector<32x256xf32>
    %20 = arith.addf %14, %19 : vector<32x256xf32>
    %21 = tpu.iota {dimensions = array<i32: 0>} : vector<32x256xi32>
    %c16_i32 = arith.constant 16 : i32
    %22 = vector.broadcast %c16_i32 : i32 to vector<32x256xi32>
    %23 = arith.cmpi sge, %21, %22 : vector<32x256xi32>
    %24 = arith.select %23, %20, %12 : vector<32x256xi1>, vector<32x256xf32>
    %c0_13 = arith.constant 0 : index
    %c0_14 = arith.constant 0 : index
    %25 = vector.load %arg6[%c0_13, %c0_14] : memref<32x256xf32, #tpu.memory_space<vmem>>, vector<32x256xf32>
    tpu.vector_store %arg6[%c0_13, %c0_14], %24 {strides = array<i32>} : memref<32x256xf32, #tpu.memory_space<vmem>>, vector<32x256xf32>,
    return
  }
  func.func @transform_0(%arg0: i32) -> (i32, i32) {
    %c0_i32 = arith.constant 0 : i32
    %c0_i32_0 = arith.constant 0 : i32
    return %arg0, %c0_i32 : i32, i32
  }
  func.func @transform_1(%arg0: i32) -> (i32, i32) {
    %c0_i32 = arith.constant 0 : i32
    %c0_i32_0 = arith.constant 0 : i32
    %c0_i32_1 = arith.constant 0 : i32
    return %c0_i32, %c0_i32_0 : i32, i32
  }
  func.func @transform_2(%arg0: i32) -> (i32, i32) {
    %c0_i32 = arith.constant 0 : i32
    %c0_i32_0 = arith.constant 0 : i32
    %c0_i32_1 = arith.constant 0 : i32
    return %c0_i32, %c0_i32_0 : i32, i32
  }
  func.func @transform_3(%arg0: i32) -> (i32, i32) {
    %c0_i32 = arith.constant 0 : i32
    %c0_i32_0 = arith.constant 0 : i32
    %c0_i32_1 = arith.constant 0 : i32
    return %c0_i32, %c0_i32_0 : i32, i32
  }
  func.func @transform_4(%arg0: i32) -> (i32, i32) {
    %c0_i32 = arith.constant 0 : i32
    %c0_i32_0 = arith.constant 0 : i32
    %c0_i32_1 = arith.constant 0 : i32
    return %c0_i32, %c0_i32_0 : i32, i32
  }
  func.func @transform_5(%arg0: i32) -> (i32, i32) {
    %c0_i32 = arith.constant 0 : i32
    %c0_i32_0 = arith.constant 0 : i32
    return %c0_i32, %arg0 : i32, i32
  }
}

</mosaic_0001>

<llo_original>
// kernel: tpu_custom_call.1
$region0: #{tpu_custom_call.1}
  #allocation0 [shape = 'u32[]', space=smem, size = 0x4, offset = 0x4, fixed_abs, tag = 'smem constant byte address 0x4 - core index']
  #allocation1 [shape = 'u32[144,128]{1,0:T(1,128)}', space=vmem, size = 0x12000, scoped, tag = 'internal scratch']
  %s0 = inlined_call_operand.vmem [shape: f32[512,32], index: 0, kind: input, shape index: {}]
  %s1 = inlined_call_operand.vmem [shape: f32[64,32], index: 1, kind: input, shape index: {}]
  %s2 = inlined_call_operand.vmem [shape: f32[64,1], index: 2, kind: input, shape index: {}]
  %s3 = inlined_call_operand.vmem [shape: f32[32,64], index: 3, kind: input, shape index: {}]
  %s4 = inlined_call_operand.vmem [shape: f32[32,1], index: 4, kind: input, shape index: {}]
  %s5 = inlined_call_operand.hbm [shape: f32[32,512], index: 5, kind: output, shape index: {}]
  %s6 = sld [smem:[#allocation0]]
  $region53: #{tpu_custom_call.1} parent=0
    _
  %s8 = ssub.s32 1, %s6
  %s9 = scalar_select 0, %s8, %s6
  $region1: #{tpu_custom_call.1} parent=0
    #allocation2 [shape = 'u8[65536]{0}', space=vmem, size = 0x10000, scoped, tag = 'output window, operand 0']
    #allocation3 [shape = 's32[2]{0}', space=sflag, size = 0x8, scoped, tag = 'scoped memory for tpu_custom_call.1']
    %10 = vsyncpa [#allocation3], 0
    %s11 = scalar_lea.sflag [#allocation3], 1
    %12 = vsyncpa %s11, 0
    loop: start=0, step=1, limit=4
    $region2: #{tpu_custom_call.1} parent=1 // loop_pre_header
      _
    $region3: #{tpu_custom_call.1} parent=1 // loop_header
      %s14 = sphi 0, %s18
      %p15 = scmp.ge.s32.totalorder %s14, 4
      %s24 = sphi 0, %s26
      %s27 = sphi 0, %s24
      %s28 = sphi 0, %s27
      %s44 = sphi 0, %s28
      %s48 = sphi 0, %s48
      %s50 = sphi 0, %s48
      %s51 = sphi 0, %s50
      %s65 = sphi 0, %s51
      %s69 = sphi 0, %s69
      %s71 = sphi 0, %s69
      %s72 = sphi 0, %s71
      %s86 = sphi 0, %s72
      %s90 = sphi 0, %s90
      %s92 = sphi 0, %s90
      %s93 = sphi 0, %s92
      %s107 = sphi 0, %s93
      %s111 = sphi 0, %s111
      %s113 = sphi 0, %s111
      %s114 = sphi 0, %s113
      %s128 = sphi 0, %s114
      %s134 = sphi 0, %s136
      %s137 = sphi 0, %s134
      %s138 = sphi 0, %s137
      %s154 = sphi 0, %s138
    $region4: #{tpu_custom_call.1} parent=1 // loop_header_branch
      %17 = sbr.rel (%p15) target = $region8
    $region5: #{tpu_custom_call.1} parent=1 // loop_body
      %s19 = ssub.s32 %s14, 1
      %s20 = ssub.s32 %s14, 2
      %s21 = sadd.s32 %s14, 1
      %s22 = ssub.s32 %s14, %s21
      %p23 = scmp.eq.s32.totalorder %s22, 0
      %s25 = sadd.s32 %s24, 1
      %s26 = scalar_select %p23, %s24, %s25
      %p29 = pneg %p23
      %p30 = scmp.eq.s32.totalorder %s14, 1
      %p31 = por %p29, %p30
      %p32 = scmp.ne.s32.totalorder %s24, %s27
      %p33 = scmp.eq.s32.totalorder %s14, 0
      %p34 = por %p32, %p33
      %p35 = scmp.ne.s32.totalorder %s24, %s27
      %p36 = scmp.eq.s32.totalorder %s19, 1
      %p37 = por %p35, %p36
      %p38 = scmp.ne.s32.totalorder %s27, %s28
      %p39 = scmp.eq.s32.totalorder %s19, 0
      %p40 = por %p38, %p39
      %p41 = scmp.ne.s32.totalorder %s27, %s28
      %p42 = scmp.eq.s32.totalorder %s20, 1
      %p43 = por %p41, %p42
      %p45 = scmp.ne.s32.totalorder %s28, %s44
      %p46 = scmp.eq.s32.totalorder %s20, 0
      %p47 = por %p45, %p46
      %s49 = sadd.s32 %s48, 1
      %p52 = scmp.eq.s32.totalorder %s14, 1
      %p53 = scmp.ne.s32.totalorder %s48, %s50
      %p54 = scmp.eq.s32.totalorder %s14, 0
      %p55 = por %p53, %p54
      %p56 = scmp.ne.s32.totalorder %s48, %s50
      %p57 = scmp.eq.s32.totalorder %s19, 1
      %p58 = por %p56, %p57
      %p59 = scmp.ne.s32.totalorder %s50, %s51
      %p60 = scmp.eq.s32.totalorder %s19, 0
      %p61 = por %p59, %p60
      %p62 = scmp.ne.s32.totalorder %s50, %s51
      %p63 = scmp.eq.s32.totalorder %s20, 1
      %p64 = por %p62, %p63
      %p66 = scmp.ne.s32.totalorder %s51, %s65
      %p67 = scmp.eq.s32.totalorder %s20, 0
      %p68 = por %p66, %p67
      %s70 = sadd.s32 %s69, 1
      %p73 = scmp.eq.s32.totalorder %s14, 1
      %p74 = scmp.ne.s32.totalorder %s69, %s71
      %p75 = scmp.eq.s32.totalorder %s14, 0
      %p76 = por %p74, %p75
      %p77 = scmp.ne.s32.totalorder %s69, %s71
      %p78 = scmp.eq.s32.totalorder %s19, 1
      %p79 = por %p77, %p78
      %p80 = scmp.ne.s32.totalorder %s71, %s72
      %p81 = scmp.eq.s32.totalorder %s19, 0
      %p82 = por %p80, %p81
      %p83 = scmp.ne.s32.totalorder %s71, %s72
      %p84 = scmp.eq.s32.totalorder %s20, 1
      %p85 = por %p83, %p84
      %p87 = scmp.ne.s32.totalorder %s72, %s86
      %p88 = scmp.eq.s32.totalorder %s20, 0
      %p89 = por %p87, %p88
      %s91 = sadd.s32 %s90, 1
      %p94 = scmp.eq.s32.totalorder %s14, 1
      %p95 = scmp.ne.s32.totalorder %s90, %s92
      %p96 = scmp.eq.s32.totalorder %s14, 0
      %p97 = por %p95, %p96
      %p98 = scmp.ne.s32.totalorder %s90, %s92
      %p99 = scmp.eq.s32.totalorder %s19, 1
      %p100 = por %p98, %p99
      %p101 = scmp.ne.s32.totalorder %s92, %s93
      %p102 = scmp.eq.s32.totalorder %s19, 0
      %p103 = por %p101, %p102
      %p104 = scmp.ne.s32.totalorder %s92, %s93
      %p105 = scmp.eq.s32.totalorder %s20, 1
      %p106 = por %p104, %p105
      %p108 = scmp.ne.s32.totalorder %s93, %s107
      %p109 = scmp.eq.s32.totalorder %s20, 0
      %p110 = por %p108, %p109
      %s112 = sadd.s32 %s111, 1
      %p115 = scmp.eq.s32.totalorder %s14, 1
      %p116 = scmp.ne.s32.totalorder %s111, %s113
      %p117 = scmp.eq.s32.totalorder %s14, 0
      %p118 = por %p116, %p117
      %p119 = scmp.ne.s32.totalorder %s111, %s113
      %p120 = scmp.eq.s32.totalorder %s19, 1
      %p121 = por %p119, %p120
      %p122 = scmp.ne.s32.totalorder %s113, %s114
      %p123 = scmp.eq.s32.totalorder %s19, 0
      %p124 = por %p122, %p123
      %p125 = scmp.ne.s32.totalorder %s113, %s114
      %p126 = scmp.eq.s32.totalorder %s20, 1
      %p127 = por %p125, %p126
      %p129 = scmp.ne.s32.totalorder %s114, %s128
      %p130 = scmp.eq.s32.totalorder %s20, 0
      %p131 = por %p129, %p130
      %s132 = ssub.s32 %s14, %s21
      %p133 = scmp.eq.s32.totalorder %s132, 0
      %s135 = sadd.s32 %s134, 1
      %s136 = scalar_select %p133, %s134, %s135
      %p139 = pneg %p133
      %p140 = scmp.eq.s32.totalorder %s14, 1
      %p141 = por %p139, %p140
      %p142 = scmp.ne.s32.totalorder %s134, %s137
      %p143 = scmp.eq.s32.totalorder %s14, 0
      %p144 = por %p142, %p143
      %p145 = scmp.ne.s32.totalorder %s134, %s137
      %p146 = scmp.eq.s32.totalorder %s19, 1
      %p147 = por %p145, %p146
      %p148 = scmp.ne.s32.totalorder %s137, %s138
      %p149 = scmp.eq.s32.totalorder %s19, 0
      %p150 = por %p148, %p149
      %p151 = scmp.ne.s32.totalorder %s137, %s138
      %p152 = scmp.eq.s32.totalorder %s20, 1
      %p153 = por %p151, %p152
      %p155 = scmp.ne.s32.totalorder %s138, %s154
      %p156 = scmp.eq.s32.totalorder %s20, 0
      %p157 = por %p155, %p156
      %p158 = scmp.le.s32.totalorder 1, %s14
      %p159 = scmp.lt.s32.totalorder %s14, 3
      %p160 = pnand %p158, %p159
      %p161 = pneg %p160
      // Predicated region
      $region9: #{tpu_custom_call.1} parent=5 // pred_check
        _
      $region10: #{tpu_custom_call.1} parent=5 // pred_check_branch
        %163 = sbr.rel (%p160) target = $region12
      $region11: #{tpu_custom_call.1} parent=5 // pred_region
        %s164 = ssub.s32 %s14, 1
        // Predicated region
        $region13: #{tpu_custom_call.1} parent=11 // pred_check
          %p165 = pneg %p61
        $region14: #{tpu_custom_call.1} parent=11 // pred_check_branch
          %167 = sbr.rel (%p165) target = $region16
        $region15: #{tpu_custom_call.1} parent=11 // pred_region
          _
        $region16: #{tpu_custom_call.1} parent=11 // pred_fallthru
          _
        // Predicated region
        $region17: #{tpu_custom_call.1} parent=11 // pred_check
          %p168 = pneg %p82
        $region18: #{tpu_custom_call.1} parent=11 // pred_check_branch
          %170 = sbr.rel (%p168) target = $region20
        $region19: #{tpu_custom_call.1} parent=11 // pred_region
          _
        $region20: #{tpu_custom_call.1} parent=11 // pred_fallthru
          _
        // Predicated region
        $region21: #{tpu_custom_call.1} parent=11 // pred_check
          %p171 = pneg %p103
        $region22: #{tpu_custom_call.1} parent=11 // pred_check_branch
          %173 = sbr.rel (%p171) target = $region24
        $region23: #{tpu_custom_call.1} parent=11 // pred_region
          _
        $region24: #{tpu_custom_call.1} parent=11 // pred_fallthru
          _
        // Predicated region
        $region25: #{tpu_custom_call.1} parent=11 // pred_check
          %p174 = pneg %p124
        $region26: #{tpu_custom_call.1} parent=11 // pred_check_branch
          %176 = sbr.rel (%p174) target = $region28
        $region27: #{tpu_custom_call.1} parent=11 // pred_region
          _
        $region28: #{tpu_custom_call.1} parent=11 // pred_fallthru
          _
      $region12: #{tpu_custom_call.1} parent=5 // pred_fallthru
        _
      %p177 = scmp.lt.s32.totalorder %s14, 2
      // Predicated region
      $region29: #{tpu_custom_call.1} parent=5 // pred_check
        %p178 = pneg %p177
      $region30: #{tpu_custom_call.1} parent=5 // pred_check_branch
        %180 = sbr.rel (%p178) target = $region32
      $region31: #{tpu_custom_call.1} parent=5 // pred_region
        // Predicated region
        $region33: #{tpu_custom_call.1} parent=31 // pred_check
          %p181 = pneg %p34
        $region34: #{tpu_custom_call.1} parent=31 // pred_check_branch
          %183 = sbr.rel (%p181) target = $region36
        $region35: #{tpu_custom_call.1} parent=31 // pred_region
          %s184 = smul.u32 32, %s14
          %p185 = scmp.lt.s32.totalorder %s184, 63
          %s186 = scalar_select %p185, %s184, 63
          %s187 = smul.addr %s186, 8
          %s188 = scalar_lea.vmem %s0, %s187
          %s189 = smul.u32 32, %s14
        $region36: #{tpu_custom_call.1} parent=31 // pred_fallthru
          _
      $region32: #{tpu_custom_call.1} parent=5 // pred_fallthru
        _
      %p190 = scmp.le.s32.totalorder 1, %s14
      %p191 = scmp.lt.s32.totalorder %s14, 3
      %p192 = pnand %p190, %p191
      %p193 = pneg %p192
      // Predicated region
      $region37: #{tpu_custom_call.1} parent=5 // pred_check
        _
      $region38: #{tpu_custom_call.1} parent=5 // pred_check_branch
        %195 = sbr.rel (%p192) target = $region40
      $region39: #{tpu_custom_call.1} parent=5 // pred_region
        %s196 = ssub.s32 %s14, 1
        %s197 = smul.u32 32, %s19
        %p198 = scmp.lt.s32.totalorder %s197, 63
        %s199 = scalar_select %p198, %s197, 63
        %s200 = smul.addr %s199, 8
        %s201 = scalar_lea.vmem %s0, %s200
        %p202 = pneg %p40
        %p203 = pneg %p37
        %p204 = pneg %p61
        %p205 = pneg %p58
        %p206 = pneg %p82
        %p207 = pneg %p79
        %p208 = pneg %p103
        %p209 = pneg %p100
        %p210 = pneg %p124
        %p211 = pneg %p121
        %p212 = pneg %p150
        %p213 = pneg %p147
        %s214 = sand.u32 %s137, 1
        %s215 = scalar_lea.sflag [#allocation3], %s214
        %s216 = sand.u32 %s137, 1
        %s217 = smul.addr %s216, 64
        %s218 = scalar_lea.vmem [#allocation2], %s217
        %s219 = smul.u32 32, %s19
        %p220 = scmp.lt.s32.totalorder %s219, 63
        %s221 = scalar_select %p220, %s219, 63
        %s222 = smul.addr %s221, 8
        %s223 = scalar_lea.vmem %s0, %s222
        %s224 = smul.u32 32, %s19
        %s225 = smul.u32 2, %s19
        %v226 = vld [vmem:[%s1] sm:$0xff]
        %v227 = vld [vmem:[%s1 + $0x8] sm:$0xff]
        %v228 = vld [vmem:[%s1 + $0x10] sm:$0xff]
        %v229 = vld [vmem:[%s1 + $0x18] sm:$0xff]
        %v230 = vld [vmem:[%s1 + $0x20] sm:$0xff]
        %v231 = vld [vmem:[%s1 + $0x28] sm:$0xff]
        %v232 = vld [vmem:[%s1 + $0x30] sm:$0xff]
        %v233 = vld [vmem:[%s1 + $0x38] sm:$0xff]
        %v234 = vld [vmem:[%s223] sm:$0xff]
        %v235 = vld [vmem:[%s223 + $0x8] sm:$0xff]
        %v236 = vld [vmem:[%s223 + $0x10] sm:$0xff]
        %v237 = vld [vmem:[%s223 + $0x18] sm:$0xff]
        %v238 = vld [vmem:[%s223 + $0x20] sm:$0xff]
        %v239 = vld [vmem:[%s223 + $0x28] sm:$0xff]
        %v240 = vld [vmem:[%s223 + $0x30] sm:$0xff]
        %v241 = vld [vmem:[%s223 + $0x38] sm:$0xff]
        %v242 = vld [vmem:[%s223 + $0x40] sm:$0xff]
        %v243 = vld [vmem:[%s223 + $0x48] sm:$0xff]
        %v244 = vld [vmem:[%s223 + $0x50] sm:$0xff]
        %v245 = vld [vmem:[%s223 + $0x58] sm:$0xff]
        %v246 = vld [vmem:[%s223 + $0x60] sm:$0xff]
        %v247 = vld [vmem:[%s223 + $0x68] sm:$0xff]
        %v248 = vld [vmem:[%s223 + $0x70] sm:$0xff]
        %v249 = vld [vmem:[%s223 + $0x78] sm:$0xff]
        %v250 = vld [vmem:[%s223 + $0x80] sm:$0xff]
        %v251 = vld [vmem:[%s223 + $0x88] sm:$0xff]
        %v252 = vld [vmem:[%s223 + $0x90] sm:$0xff]
        %v253 = vld [vmem:[%s223 + $0x98] sm:$0xff]
        %v254 = vld [vmem:[%s223 + $0xa0] sm:$0xff]
        %v255 = vld [vmem:[%s223 + $0xa8] sm:$0xff]
        %v256 = vld [vmem:[%s223 + $0xb0] sm:$0xff]
        %v257 = vld [vmem:[%s223 + $0xb8] sm:$0xff]
        %v258 = vld [vmem:[%s223 + $0xc0] sm:$0xff]
        %v259 = vld [vmem:[%s223 + $0xc8] sm:$0xff]
        %v260 = vld [vmem:[%s223 + $0xd0] sm:$0xff]
        %v261 = vld [vmem:[%s223 + $0xd8] sm:$0xff]
        %v262 = vld [vmem:[%s223 + $0xe0] sm:$0xff]
        %v263 = vld [vmem:[%s223 + $0xe8] sm:$0xff]
        %v264 = vld [vmem:[%s223 + $0xf0] sm:$0xff]
        %v265 = vld [vmem:[%s223 + $0xf8] sm:$0xff]
        %v266 = vld [vmem:[%s2] sm:$0xff]
        %v267 = vld [vmem:[%s2 + $0x8] sm:$0xff]
        %v268 = vld [vmem:[%s2 + $0x10] sm:$0xff]
        %v269 = vld [vmem:[%s2 + $0x18] sm:$0xff]
        %v270 = vld [vmem:[%s2 + $0x20] sm:$0xff]
        %v271 = vld [vmem:[%s2 + $0x28] sm:$0xff]
        %v272 = vld [vmem:[%s2 + $0x30] sm:$0xff]
        %v273 = vld [vmem:[%s2 + $0x38] sm:$0xff]
        %275 = vset.pattern.permute.xlu0 0
        %276 = vperm.xlu0 %275, %v266
        %v277 = vpop.permute.xlu0 %276
        %280 = vset.pattern.permute.xlu0 0
        %281 = vperm.xlu0 %280, %v267
        %v282 = vpop.permute.xlu0 %281
        %285 = vset.pattern.permute.xlu0 0
        %286 = vperm.xlu0 %285, %v268
        %v287 = vpop.permute.xlu0 %286
        %290 = vset.pattern.permute.xlu0 0
        %291 = vperm.xlu0 %290, %v269
        %v292 = vpop.permute.xlu0 %291
        %295 = vset.pattern.permute.xlu0 0
        %296 = vperm.xlu0 %295, %v270
        %v297 = vpop.permute.xlu0 %296
        %300 = vset.pattern.permute.xlu0 0
        %301 = vperm.xlu0 %300, %v271
        %v302 = vpop.permute.xlu0 %301
        %305 = vset.pattern.permute.xlu0 0
        %306 = vperm.xlu0 %305, %v272
        %v307 = vpop.permute.xlu0 %306
        %310 = vset.pattern.permute.xlu0 0
        %311 = vperm.xlu0 %310, %v273
        %v312 = vpop.permute.xlu0 %311
        %vm314 = vcmask 261120
        %v316 = vsel %vm314, %v226, 0
        %v319 = vsel %vm314, %v227, 0
        %v322 = vsel %vm314, %v228, 0
        %v325 = vsel %vm314, %v229, 0
        %v328 = vsel %vm314, %v230, 0
        %v331 = vsel %vm314, %v231, 0
        %v334 = vsel %vm314, %v232, 0
        %v337 = vsel %vm314, %v233, 0
        %v340 = vsel %vm314, %v234, 0
        %v343 = vsel %vm314, %v235, 0
        %v346 = vsel %vm314, %v236, 0
        %v349 = vsel %vm314, %v237, 0
        %v352 = vsel %vm314, %v238, 0
        %v355 = vsel %vm314, %v239, 0
        %v358 = vsel %vm314, %v240, 0
        %v361 = vsel %vm314, %v241, 0
        %v364 = vsel %vm314, %v242, 0
        %v367 = vsel %vm314, %v243, 0
        %v370 = vsel %vm314, %v244, 0
        %v373 = vsel %vm314, %v245, 0
        %v376 = vsel %vm314, %v246, 0
        %v379 = vsel %vm314, %v247, 0
        %v382 = vsel %vm314, %v248, 0
        %v385 = vsel %vm314, %v249, 0
        %v388 = vsel %vm314, %v250, 0
        %v391 = vsel %vm314, %v251, 0
        %v394 = vsel %vm314, %v252, 0
        %v397 = vsel %vm314, %v253, 0
        %v400 = vsel %vm314, %v254, 0
        %v403 = vsel %vm314, %v255, 0
        %v406 = vsel %vm314, %v256, 0
        %v409 = vsel %vm314, %v257, 0
        %v412 = vsel %vm314, %v258, 0
        %v415 = vsel %vm314, %v259, 0
        %v418 = vsel %vm314, %v260, 0
        %v421 = vsel %vm314, %v261, 0
        %v424 = vsel %vm314, %v262, 0
        %v427 = vsel %vm314, %v263, 0
        %v430 = vsel %vm314, %v264, 0
        %v433 = vsel %vm314, %v265, 0
        %435 = vmatprep.subr.mxu0 0.0
        %v436 = vand.u32 %v385, 4294901760
        %437 = vmatpush1.xpose.msra.mxu0 %v436
        %438 = vmatprep.subr.mxu0 0.0
        %v439 = vand.u32 %v382, 4294901760
        %440 = vmatpush1.xpose.msra.mxu0 %v439
        %441 = vmatprep.subr.mxu0 0.0
        %v442 = vand.u32 %v379, 4294901760
        %443 = vmatpush1.xpose.msra.mxu0 %v442
        %444 = vmatprep.subr.mxu0 0.0
        %v445 = vand.u32 %v376, 4294901760
        %446 = vmatpush1.xpose.msra.mxu0 %v445
        %447 = vmatprep.subr.mxu0 0.0
        %v448 = vand.u32 %v373, 4294901760
        %449 = vmatpush1.xpose.msra.mxu0 %v448
        %450 = vmatprep.subr.mxu0 0.0
        %v451 = vand.u32 %v370, 4294901760
        %452 = vmatpush1.xpose.msra.mxu0 %v451
        %453 = vmatprep.subr.mxu0 0.0
        %v454 = vand.u32 %v367, 4294901760
        %455 = vmatpush1.xpose.msra.mxu0 %v454
        %456 = vmatprep.subr.mxu0 0.0
        %v457 = vand.u32 %v364, 4294901760
        %458 = vmatpush1.xpose.msra.mxu0 %v457
        %459 = vmatprep.subr.mxu0 0.0
        %v460 = vand.u32 %v361, 4294901760
        %461 = vmatpush1.xpose.msra.mxu0 %v460
        %462 = vmatprep.subr.mxu0 0.0
        %v463 = vand.u32 %v358, 4294901760
        %464 = vmatpush1.xpose.msra.mxu0 %v463
        %465 = vmatprep.subr.mxu0 0.0
        %v466 = vand.u32 %v355, 4294901760
        %467 = vmatpush1.xpose.msra.mxu0 %v466
        %468 = vmatprep.subr.mxu0 0.0
        %v469 = vand.u32 %v352, 4294901760
        %470 = vmatpush1.xpose.msra.mxu0 %v469
        %471 = vmatprep.subr.mxu0 0.0
        %v472 = vand.u32 %v349, 4294901760
        %473 = vmatpush1.xpose.msra.mxu0 %v472
        %474 = vmatprep.subr.mxu0 0.0
        %v475 = vand.u32 %v346, 4294901760
        %476 = vmatpush1.xpose.msra.mxu0 %v475
        %477 = vmatprep.subr.mxu0 0.0
        %v478 = vand.u32 %v343, 4294901760
        %479 = vmatpush1.xpose.msra.mxu0 %v478
        %480 = vmatprep.subr.mxu0 0.0
        %v481 = vand.u32 %v340, 4294901760
        %482 = vmatpush1.xpose.msra.mxu0 %v481
        %483 = vmatprep.subr.mxu0 0.0
        %v484 = vand.u32 %v433, 4294901760
        %485 = vmatpush2.xpose.msra.mxu0 %v484
        %486 = vmatprep.subr.mxu0 0.0
        %v487 = vand.u32 %v430, 4294901760
        %488 = vmatpush2.xpose.msra.mxu0 %v487
        %489 = vmatprep.subr.mxu0 0.0
        %v490 = vand.u32 %v427, 4294901760
        %491 = vmatpush2.xpose.msra.mxu0 %v490
        %492 = vmatprep.subr.mxu0 0.0
        %v493 = vand.u32 %v424, 4294901760
        %494 = vmatpush2.xpose.msra.mxu0 %v493
        %495 = vmatprep.subr.mxu0 0.0
        %v496 = vand.u32 %v421, 4294901760
        %497 = vmatpush2.xpose.msra.mxu0 %v496
        %498 = vmatprep.subr.mxu0 0.0
        %v499 = vand.u32 %v418, 4294901760
        %500 = vmatpush2.xpose.msra.mxu0 %v499
        %501 = vmatprep.subr.mxu0 0.0
        %v502 = vand.u32 %v415, 4294901760
        %503 = vmatpush2.xpose.msra.mxu0 %v502
        %504 = vmatprep.subr.mxu0 0.0
        %v505 = vand.u32 %v412, 4294901760
        %506 = vmatpush2.xpose.msra.mxu0 %v505
        %507 = vmatprep.subr.mxu0 0.0
        %v508 = vand.u32 %v409, 4294901760
        %509 = vmatpush2.xpose.msra.mxu0 %v508
        %510 = vmatprep.subr.mxu0 0.0
        %v511 = vand.u32 %v406, 4294901760
        %512 = vmatpush2.xpose.msra.mxu0 %v511
        %513 = vmatprep.subr.mxu0 0.0
        %v514 = vand.u32 %v403, 4294901760
        %515 = vmatpush2.xpose.msra.mxu0 %v514
        %516 = vmatprep.subr.mxu0 0.0
        %v517 = vand.u32 %v400, 4294901760
        %518 = vmatpush2.xpose.msra.mxu0 %v517
        %519 = vmatprep.subr.mxu0 0.0
        %v520 = vand.u32 %v397, 4294901760
        %521 = vmatpush2.xpose.msra.mxu0 %v520
        %522 = vmatprep.subr.mxu0 0.0
        %v523 = vand.u32 %v394, 4294901760
        %524 = vmatpush2.xpose.msra.mxu0 %v523
        %525 = vmatprep.subr.mxu0 0.0
        %v526 = vand.u32 %v391, 4294901760
        %527 = vmatpush2.xpose.msra.mxu0 %v526
        %528 = vmatprep.subr.mxu0 0.0
        %v529 = vand.u32 %v388, 4294901760
        %530 = vmatpush2.xpose.msra.mxu0 %v529
        %531 = vmatprep.mubr.f32.mxu0 0.0
        %v532 = vand.u32 %v316, 4294901760
        %v533 = vsub.f32 %v316, %v532
        %v534 = vand.u32 %v533, 4294901760
        %v535 = vsub.f32 %v533, %v534
        %v536 = vand.u32 %v535, 4294901760
        %537 = vmatmul.mubr.f32.gmra.mxu0 %v536
        %v538 = vpop.f32.mrf.mxu0
        %v539 = vadd.f32 %v277, %v538
        %v540 = vpop.f32.mrf.mxu0
        %v541 = vadd.f32 %v277, %v540
        %542 = vmatprep.mubr.f32.mxu0 0.0
        %v543 = vand.u32 %v319, 4294901760
        %v544 = vsub.f32 %v319, %v543
        %v545 = vand.u32 %v544, 4294901760
        %v546 = vsub.f32 %v544, %v545
        %v547 = vand.u32 %v546, 4294901760
        %548 = vmatmul.mubr.f32.gmra.mxu0 %v547
        %v549 = vpop.f32.mrf.mxu0
        %v550 = vadd.f32 %v282, %v549
        %v551 = vpop.f32.mrf.mxu0
        %v552 = vadd.f32 %v282, %v551
        %553 = vmatprep.mubr.f32.mxu0 0.0
        %v554 = vand.u32 %v322, 4294901760
        %v555 = vsub.f32 %v322, %v554
        %v556 = vand.u32 %v555, 4294901760
        %v557 = vsub.f32 %v555, %v556
        %v558 = vand.u32 %v557, 4294901760
        %559 = vmatmul.mubr.f32.gmra.mxu0 %v558
        %v560 = vpop.f32.mrf.mxu0
        %v561 = vadd.f32 %v287, %v560
        %v562 = vpop.f32.mrf.mxu0
        %v563 = vadd.f32 %v287, %v562
        %564 = vmatprep.mubr.f32.mxu0 0.0
        %v565 = vand.u32 %v325, 4294901760
        %v566 = vsub.f32 %v325, %v565
        %v567 = vand.u32 %v566, 4294901760
        %v568 = vsub.f32 %v566, %v567
        %v569 = vand.u32 %v568, 4294901760
        %570 = vmatmul.mubr.f32.gmra.mxu0 %v569
        %v571 = vpop.f32.mrf.mxu0
        %v572 = vadd.f32 %v292, %v571
        %v573 = vpop.f32.mrf.mxu0
        %v574 = vadd.f32 %v292, %v573
        %575 = vmatprep.mubr.f32.mxu0 0.0
        %v576 = vand.u32 %v328, 4294901760
        %v577 = vsub.f32 %v328, %v576
        %v578 = vand.u32 %v577, 4294901760
        %v579 = vsub.f32 %v577, %v578
        %v580 = vand.u32 %v579, 4294901760
        %581 = vmatmul.mubr.f32.gmra.mxu0 %v580
        %v582 = vpop.f32.mrf.mxu0
        %v583 = vadd.f32 %v297, %v582
        %v584 = vpop.f32.mrf.mxu0
        %v585 = vadd.f32 %v297, %v584
        %586 = vmatprep.mubr.f32.mxu0 0.0
        %v587 = vand.u32 %v331, 4294901760
        %v588 = vsub.f32 %v331, %v587
        %v589 = vand.u32 %v588, 4294901760
        %v590 = vsub.f32 %v588, %v589
        %v591 = vand.u32 %v590, 4294901760
        %592 = vmatmul.mubr.f32.gmra.mxu0 %v591
        %v593 = vpop.f32.mrf.mxu0
        %v594 = vadd.f32 %v302, %v593
        %v595 = vpop.f32.mrf.mxu0
        %v596 = vadd.f32 %v302, %v595
        %597 = vmatprep.mubr.f32.mxu0 0.0
        %v598 = vand.u32 %v334, 4294901760
        %v599 = vsub.f32 %v334, %v598
        %v600 = vand.u32 %v599, 4294901760
        %v601 = vsub.f32 %v599, %v600
        %v602 = vand.u32 %v601, 4294901760
        %603 = vmatmul.mubr.f32.gmra.mxu0 %v602
        %v604 = vpop.f32.mrf.mxu0
        %v605 = vadd.f32 %v307, %v604
        %v606 = vpop.f32.mrf.mxu0
        %v607 = vadd.f32 %v307, %v606
        %608 = vmatprep.mubr.f32.mxu0 0.0
        %v609 = vand.u32 %v337, 4294901760
        %v610 = vsub.f32 %v337, %v609
        %v611 = vand.u32 %v610, 4294901760
        %v612 = vsub.f32 %v610, %v611
        %v613 = vand.u32 %v612, 4294901760
        %614 = vmatmul.mubr.f32.gmra.mxu0 %v613
        %v615 = vpop.f32.mrf.mxu0
        %v616 = vadd.f32 %v312, %v615
        %v617 = vpop.f32.mrf.mxu0
        %v618 = vadd.f32 %v312, %v617
        %619 = vdwg.mxu0
        %620 = vmatprep.subr.mxu0 0.0
        %v621 = vand.u32 %v385, 4294901760
        %v622 = vsub.f32 %v385, %v621
        %v623 = vand.u32 %v622, 4294901760
        %v624 = vsub.f32 %v622, %v623
        %v625 = vand.u32 %v624, 4294901760
        %626 = vmatpush1.xpose.msra.mxu0 %v625
        %627 = vmatprep.subr.mxu0 0.0
        %v628 = vand.u32 %v382, 4294901760
        %v629 = vsub.f32 %v382, %v628
        %v630 = vand.u32 %v629, 4294901760
        %v631 = vsub.f32 %v629, %v630
        %v632 = vand.u32 %v631, 4294901760
        %633 = vmatpush1.xpose.msra.mxu0 %v632
        %634 = vmatprep.subr.mxu0 0.0
        %v635 = vand.u32 %v379, 4294901760
        %v636 = vsub.f32 %v379, %v635
        %v637 = vand.u32 %v636, 4294901760
        %v638 = vsub.f32 %v636, %v637
        %v639 = vand.u32 %v638, 4294901760
        %640 = vmatpush1.xpose.msra.mxu0 %v639
        %641 = vmatprep.subr.mxu0 0.0
        %v642 = vand.u32 %v376, 4294901760
        %v643 = vsub.f32 %v376, %v642
        %v644 = vand.u32 %v643, 4294901760
        %v645 = vsub.f32 %v643, %v644
        %v646 = vand.u32 %v645, 4294901760
        %647 = vmatpush1.xpose.msra.mxu0 %v646
        %648 = vmatprep.subr.mxu0 0.0
        %v649 = vand.u32 %v373, 4294901760
        %v650 = vsub.f32 %v373, %v649
        %v651 = vand.u32 %v650, 4294901760
        %v652 = vsub.f32 %v650, %v651
        %v653 = vand.u32 %v652, 4294901760
        %654 = vmatpush1.xpose.msra.mxu0 %v653
        %655 = vmatprep.subr.mxu0 0.0
        %v656 = vand.u32 %v370, 4294901760
        %v657 = vsub.f32 %v370, %v656
        %v658 = vand.u32 %v657, 4294901760
        %v659 = vsub.f32 %v657, %v658
        %v660 = vand.u32 %v659, 4294901760
        %661 = vmatpush1.xpose.msra.mxu0 %v660
        %662 = vmatprep.subr.mxu0 0.0
        %v663 = vand.u32 %v367, 4294901760
        %v664 = vsub.f32 %v367, %v663
        %v665 = vand.u32 %v664, 4294901760
        %v666 = vsub.f32 %v664, %v665
        %v667 = vand.u32 %v666, 4294901760
        %668 = vmatpush1.xpose.msra.mxu0 %v667
        %669 = vmatprep.subr.mxu0 0.0
        %v670 = vand.u32 %v364, 4294901760
        %v671 = vsub.f32 %v364, %v670
        %v672 = vand.u32 %v671, 4294901760
        %v673 = vsub.f32 %v671, %v672
        %v674 = vand.u32 %v673, 4294901760
        %675 = vmatpush1.xpose.msra.mxu0 %v674
        %676 = vmatprep.subr.mxu0 0.0
        %v677 = vand.u32 %v361, 4294901760
        %v678 = vsub.f32 %v361, %v677
        %v679 = vand.u32 %v678, 4294901760
        %v680 = vsub.f32 %v678, %v679
        %v681 = vand.u32 %v680, 4294901760
        %682 = vmatpush1.xpose.msra.mxu0 %v681
        %683 = vmatprep.subr.mxu0 0.0
        %v684 = vand.u32 %v358, 4294901760
        %v685 = vsub.f32 %v358, %v684
        %v686 = vand.u32 %v685, 4294901760
        %v687 = vsub.f32 %v685, %v686
        %v688 = vand.u32 %v687, 4294901760
        %689 = vmatpush1.xpose.msra.mxu0 %v688
        %690 = vmatprep.subr.mxu0 0.0
        %v691 = vand.u32 %v355, 4294901760
        %v692 = vsub.f32 %v355, %v691
        %v693 = vand.u32 %v692, 4294901760
        %v694 = vsub.f32 %v692, %v693
        %v695 = vand.u32 %v694, 4294901760
        %696 = vmatpush1.xpose.msra.mxu0 %v695
        %697 = vmatprep.subr.mxu0 0.0
        %v698 = vand.u32 %v352, 4294901760
        %v699 = vsub.f32 %v352, %v698
        %v700 = vand.u32 %v699, 4294901760
        %v701 = vsub.f32 %v699, %v700
        %v702 = vand.u32 %v701, 4294901760
        %703 = vmatpush1.xpose.msra.mxu0 %v702
        %704 = vmatprep.subr.mxu0 0.0
        %v705 = vand.u32 %v349, 4294901760
        %v706 = vsub.f32 %v349, %v705
        %v707 = vand.u32 %v706, 4294901760
        %v708 = vsub.f32 %v706, %v707
        %v709 = vand.u32 %v708, 4294901760
        %710 = vmatpush1.xpose.msra.mxu0 %v709
        %711 = vmatprep.subr.mxu0 0.0
        %v712 = vand.u32 %v346, 4294901760
        %v713 = vsub.f32 %v346, %v712
        %v714 = vand.u32 %v713, 4294901760
        %v715 = vsub.f32 %v713, %v714
        %v716 = vand.u32 %v715, 4294901760
        %717 = vmatpush1.xpose.msra.mxu0 %v716
        %718 = vmatprep.subr.mxu0 0.0
        %v719 = vand.u32 %v343, 4294901760
        %v720 = vsub.f32 %v343, %v719
        %v721 = vand.u32 %v720, 4294901760
        %v722 = vsub.f32 %v720, %v721
        %v723 = vand.u32 %v722, 4294901760
        %724 = vmatpush1.xpose.msra.mxu0 %v723
        %725 = vmatprep.subr.mxu0 0.0
        %v726 = vand.u32 %v340, 4294901760
        %v727 = vsub.f32 %v340, %v726
        %v728 = vand.u32 %v727, 4294901760
        %v729 = vsub.f32 %v727, %v728
        %v730 = vand.u32 %v729, 4294901760
        %731 = vmatpush1.xpose.msra.mxu0 %v730
        %732 = vmatprep.subr.mxu0 0.0
        %v733 = vand.u32 %v433, 4294901760
        %v734 = vsub.f32 %v433, %v733
        %v735 = vand.u32 %v734, 4294901760
        %v736 = vsub.f32 %v734, %v735
        %v737 = vand.u32 %v736, 4294901760
        %738 = vmatpush2.xpose.msra.mxu0 %v737
        %739 = vmatprep.subr.mxu0 0.0
        %v740 = vand.u32 %v430, 4294901760
        %v741 = vsub.f32 %v430, %v740
        %v742 = vand.u32 %v741, 4294901760
        %v743 = vsub.f32 %v741, %v742
        %v744 = vand.u32 %v743, 4294901760
        %745 = vmatpush2.xpose.msra.mxu0 %v744
        %746 = vmatprep.subr.mxu0 0.0
        %v747 = vand.u32 %v427, 4294901760
        %v748 = vsub.f32 %v427, %v747
        %v749 = vand.u32 %v748, 4294901760
        %v750 = vsub.f32 %v748, %v749
        %v751 = vand.u32 %v750, 4294901760
        %752 = vmatpush2.xpose.msra.mxu0 %v751
        %753 = vmatprep.subr.mxu0 0.0
        %v754 = vand.u32 %v424, 4294901760
        %v755 = vsub.f32 %v424, %v754
        %v756 = vand.u32 %v755, 4294901760
        %v757 = vsub.f32 %v755, %v756
        %v758 = vand.u32 %v757, 4294901760
        %759 = vmatpush2.xpose.msra.mxu0 %v758
        %760 = vmatprep.subr.mxu0 0.0
        %v761 = vand.u32 %v421, 4294901760
        %v762 = vsub.f32 %v421, %v761
        %v763 = vand.u32 %v762, 4294901760
        %v764 = vsub.f32 %v762, %v763
        %v765 = vand.u32 %v764, 4294901760
        %766 = vmatpush2.xpose.msra.mxu0 %v765
        %767 = vmatprep.subr.mxu0 0.0
        %v768 = vand.u32 %v418, 4294901760
        %v769 = vsub.f32 %v418, %v768
        %v770 = vand.u32 %v769, 4294901760
        %v771 = vsub.f32 %v769, %v770
        %v772 = vand.u32 %v771, 4294901760
        %773 = vmatpush2.xpose.msra.mxu0 %v772
        %774 = vmatprep.subr.mxu0 0.0
        %v775 = vand.u32 %v415, 4294901760
        %v776 = vsub.f32 %v415, %v775
        %v777 = vand.u32 %v776, 4294901760
        %v778 = vsub.f32 %v776, %v777
        %v779 = vand.u32 %v778, 4294901760
        %780 = vmatpush2.xpose.msra.mxu0 %v779
        %781 = vmatprep.subr.mxu0 0.0
        %v782 = vand.u32 %v412, 4294901760
        %v783 = vsub.f32 %v412, %v782
        %v784 = vand.u32 %v783, 4294901760
        %v785 = vsub.f32 %v783, %v784
        %v786 = vand.u32 %v785, 4294901760
        %787 = vmatpush2.xpose.msra.mxu0 %v786
        %788 = vmatprep.subr.mxu0 0.0
        %v789 = vand.u32 %v409, 4294901760
        %v790 = vsub.f32 %v409, %v789
        %v791 = vand.u32 %v790, 4294901760
        %v792 = vsub.f32 %v790, %v791
        %v793 = vand.u32 %v792, 4294901760
        %794 = vmatpush2.xpose.msra.mxu0 %v793
        %795 = vmatprep.subr.mxu0 0.0
        %v796 = vand.u32 %v406, 4294901760
        %v797 = vsub.f32 %v406, %v796
        %v798 = vand.u32 %v797, 4294901760
        %v799 = vsub.f32 %v797, %v798
        %v800 = vand.u32 %v799, 4294901760
        %801 = vmatpush2.xpose.msra.mxu0 %v800
        %802 = vmatprep.subr.mxu0 0.0
        %v803 = vand.u32 %v403, 4294901760
        %v804 = vsub.f32 %v403, %v803
        %v805 = vand.u32 %v804, 4294901760
        %v806 = vsub.f32 %v804, %v805
        %v807 = vand.u32 %v806, 4294901760
        %808 = vmatpush2.xpose.msra.mxu0 %v807
        %809 = vmatprep.subr.mxu0 0.0
        %v810 = vand.u32 %v400, 4294901760
        %v811 = vsub.f32 %v400, %v810
        %v812 = vand.u32 %v811, 4294901760
        %v813 = vsub.f32 %v811, %v812
        %v814 = vand.u32 %v813, 4294901760
        %815 = vmatpush2.xpose.msra.mxu0 %v814
        %816 = vmatprep.subr.mxu0 0.0
        %v817 = vand.u32 %v397, 4294901760
        %v818 = vsub.f32 %v397, %v817
        %v819 = vand.u32 %v818, 4294901760
        %v820 = vsub.f32 %v818, %v819
        %v821 = vand.u32 %v820, 4294901760
        %822 = vmatpush2.xpose.msra.mxu0 %v821
        %823 = vmatprep.subr.mxu0 0.0
        %v824 = vand.u32 %v394, 4294901760
        %v825 = vsub.f32 %v394, %v824
        %v826 = vand.u32 %v825, 4294901760
        %v827 = vsub.f32 %v825, %v826
        %v828 = vand.u32 %v827, 4294901760
        %829 = vmatpush2.xpose.msra.mxu0 %v828
        %830 = vmatprep.subr.mxu0 0.0
        %v831 = vand.u32 %v391, 4294901760
        %v832 = vsub.f32 %v391, %v831
        %v833 = vand.u32 %v832, 4294901760
        %v834 = vsub.f32 %v832, %v833
        %v835 = vand.u32 %v834, 4294901760
        %836 = vmatpush2.xpose.msra.mxu0 %v835
        %837 = vmatprep.subr.mxu0 0.0
        %v838 = vand.u32 %v388, 4294901760
        %v839 = vsub.f32 %v388, %v838
        %v840 = vand.u32 %v839, 4294901760
        %v841 = vsub.f32 %v839, %v840
        %v842 = vand.u32 %v841, 4294901760
        %843 = vmatpush2.xpose.msra.mxu0 %v842
        %844 = vmatprep.mubr.f32.mxu0 0.0
        %v845 = vand.u32 %v316, 4294901760
        %846 = vmatmul.mubr.f32.gmra.mxu0 %v845
        %v847 = vpop.f32.mrf.mxu0
        %v848 = vadd.f32 %v539, %v847
        %v849 = vpop.f32.mrf.mxu0
        %v850 = vadd.f32 %v541, %v849
        %851 = vmatprep.mubr.f32.mxu0 0.0
        %v852 = vand.u32 %v319, 4294901760
        %853 = vmatmul.mubr.f32.gmra.mxu0 %v852
        %v854 = vpop.f32.mrf.mxu0
        %v855 = vadd.f32 %v550, %v854
        %v856 = vpop.f32.mrf.mxu0
        %v857 = vadd.f32 %v552, %v856
        %858 = vmatprep.mubr.f32.mxu0 0.0
        %v859 = vand.u32 %v322, 4294901760
        %860 = vmatmul.mubr.f32.gmra.mxu0 %v859
        %v861 = vpop.f32.mrf.mxu0
        %v862 = vadd.f32 %v561, %v861
        %v863 = vpop.f32.mrf.mxu0
        %v864 = vadd.f32 %v563, %v863
        %865 = vmatprep.mubr.f32.mxu0 0.0
        %v866 = vand.u32 %v325, 4294901760
        %867 = vmatmul.mubr.f32.gmra.mxu0 %v866
        %v868 = vpop.f32.mrf.mxu0
        %v869 = vadd.f32 %v572, %v868
        %v870 = vpop.f32.mrf.mxu0
        %v871 = vadd.f32 %v574, %v870
        %872 = vmatprep.mubr.f32.mxu0 0.0
        %v873 = vand.u32 %v328, 4294901760
        %874 = vmatmul.mubr.f32.gmra.mxu0 %v873
        %v875 = vpop.f32.mrf.mxu0
        %v876 = vadd.f32 %v583, %v875
        %v877 = vpop.f32.mrf.mxu0
        %v878 = vadd.f32 %v585, %v877
        %879 = vmatprep.mubr.f32.mxu0 0.0
        %v880 = vand.u32 %v331, 4294901760
        %881 = vmatmul.mubr.f32.gmra.mxu0 %v880
        %v882 = vpop.f32.mrf.mxu0
        %v883 = vadd.f32 %v594, %v882
        %v884 = vpop.f32.mrf.mxu0
        %v885 = vadd.f32 %v596, %v884
        %886 = vmatprep.mubr.f32.mxu0 0.0
        %v887 = vand.u32 %v334, 4294901760
        %888 = vmatmul.mubr.f32.gmra.mxu0 %v887
        %v889 = vpop.f32.mrf.mxu0
        %v890 = vadd.f32 %v605, %v889
        %v891 = vpop.f32.mrf.mxu0
        %v892 = vadd.f32 %v607, %v891
        %893 = vmatprep.mubr.f32.mxu0 0.0
        %v894 = vand.u32 %v337, 4294901760
        %895 = vmatmul.mubr.f32.gmra.mxu0 %v894
        %v896 = vpop.f32.mrf.mxu0
        %v897 = vadd.f32 %v616, %v896
        %v898 = vpop.f32.mrf.mxu0
        %v899 = vadd.f32 %v618, %v898
        %900 = vdwg.mxu0
        %901 = vmatprep.subr.mxu0 0.0
        %v902 = vand.u32 %v385, 4294901760
        %v903 = vsub.f32 %v385, %v902
        %904 = vmatpush1.xpose.msra.mxu0 %v903
        %905 = vmatprep.subr.mxu0 0.0
        %v906 = vand.u32 %v382, 4294901760
        %v907 = vsub.f32 %v382, %v906
        %908 = vmatpush1.xpose.msra.mxu0 %v907
        %909 = vmatprep.subr.mxu0 0.0
        %v910 = vand.u32 %v379, 4294901760
        %v911 = vsub.f32 %v379, %v910
        %912 = vmatpush1.xpose.msra.mxu0 %v911
        %913 = vmatprep.subr.mxu0 0.0
        %v914 = vand.u32 %v376, 4294901760
        %v915 = vsub.f32 %v376, %v914
        %916 = vmatpush1.xpose.msra.mxu0 %v915
        %917 = vmatprep.subr.mxu0 0.0
        %v918 = vand.u32 %v373, 4294901760
        %v919 = vsub.f32 %v373, %v918
        %920 = vmatpush1.xpose.msra.mxu0 %v919
        %921 = vmatprep.subr.mxu0 0.0
        %v922 = vand.u32 %v370, 4294901760
        %v923 = vsub.f32 %v370, %v922
        %924 = vmatpush1.xpose.msra.mxu0 %v923
        %925 = vmatprep.subr.mxu0 0.0
        %v926 = vand.u32 %v367, 4294901760
        %v927 = vsub.f32 %v367, %v926
        %928 = vmatpush1.xpose.msra.mxu0 %v927
        %929 = vmatprep.subr.mxu0 0.0
        %v930 = vand.u32 %v364, 4294901760
        %v931 = vsub.f32 %v364, %v930
        %932 = vmatpush1.xpose.msra.mxu0 %v931
        %933 = vmatprep.subr.mxu0 0.0
        %v934 = vand.u32 %v361, 4294901760
        %v935 = vsub.f32 %v361, %v934
        %936 = vmatpush1.xpose.msra.mxu0 %v935
        %937 = vmatprep.subr.mxu0 0.0
        %v938 = vand.u32 %v358, 4294901760
        %v939 = vsub.f32 %v358, %v938
        %940 = vmatpush1.xpose.msra.mxu0 %v939
        %941 = vmatprep.subr.mxu0 0.0
        %v942 = vand.u32 %v355, 4294901760
        %v943 = vsub.f32 %v355, %v942
        %944 = vmatpush1.xpose.msra.mxu0 %v943
        %945 = vmatprep.subr.mxu0 0.0
        %v946 = vand.u32 %v352, 4294901760
        %v947 = vsub.f32 %v352, %v946
        %948 = vmatpush1.xpose.msra.mxu0 %v947
        %949 = vmatprep.subr.mxu0 0.0
        %v950 = vand.u32 %v349, 4294901760
        %v951 = vsub.f32 %v349, %v950
        %952 = vmatpush1.xpose.msra.mxu0 %v951
        %953 = vmatprep.subr.mxu0 0.0
        %v954 = vand.u32 %v346, 4294901760
        %v955 = vsub.f32 %v346, %v954
        %956 = vmatpush1.xpose.msra.mxu0 %v955
        %957 = vmatprep.subr.mxu0 0.0
        %v958 = vand.u32 %v343, 4294901760
        %v959 = vsub.f32 %v343, %v958
        %960 = vmatpush1.xpose.msra.mxu0 %v959
        %961 = vmatprep.subr.mxu0 0.0
        %v962 = vand.u32 %v340, 4294901760
        %v963 = vsub.f32 %v340, %v962
        %964 = vmatpush1.xpose.msra.mxu0 %v963
        %965 = vmatprep.subr.mxu0 0.0
        %v966 = vand.u32 %v433, 4294901760
        %v967 = vsub.f32 %v433, %v966
        %968 = vmatpush2.xpose.msra.mxu0 %v967
        %969 = vmatprep.subr.mxu0 0.0
        %v970 = vand.u32 %v430, 4294901760
        %v971 = vsub.f32 %v430, %v970
        %972 = vmatpush2.xpose.msra.mxu0 %v971
        %973 = vmatprep.subr.mxu0 0.0
        %v974 = vand.u32 %v427, 4294901760
        %v975 = vsub.f32 %v427, %v974
        %976 = vmatpush2.xpose.msra.mxu0 %v975
        %977 = vmatprep.subr.mxu0 0.0
        %v978 = vand.u32 %v424, 4294901760
        %v979 = vsub.f32 %v424, %v978
        %980 = vmatpush2.xpose.msra.mxu0 %v979
        %981 = vmatprep.subr.mxu0 0.0
        %v982 = vand.u32 %v421, 4294901760
        %v983 = vsub.f32 %v421, %v982
        %984 = vmatpush2.xpose.msra.mxu0 %v983
        %985 = vmatprep.subr.mxu0 0.0
        %v986 = vand.u32 %v418, 4294901760
        %v987 = vsub.f32 %v418, %v986
        %988 = vmatpush2.xpose.msra.mxu0 %v987
        %989 = vmatprep.subr.mxu0 0.0
        %v990 = vand.u32 %v415, 4294901760
        %v991 = vsub.f32 %v415, %v990
        %992 = vmatpush2.xpose.msra.mxu0 %v991
        %993 = vmatprep.subr.mxu0 0.0
        %v994 = vand.u32 %v412, 4294901760
        %v995 = vsub.f32 %v412, %v994
        %996 = vmatpush2.xpose.msra.mxu0 %v995
        %997 = vmatprep.subr.mxu0 0.0
        %v998 = vand.u32 %v409, 4294901760
        %v999 = vsub.f32 %v409, %v998
        %1000 = vmatpush2.xpose.msra.mxu0 %v999
        %1001 = vmatprep.subr.mxu0 0.0
        %v1002 = vand.u32 %v406, 4294901760
        %v1003 = vsub.f32 %v406, %v1002
        %1004 = vmatpush2.xpose.msra.mxu0 %v1003
        %1005 = vmatprep.subr.mxu0 0.0
        %v1006 = vand.u32 %v403, 4294901760
        %v1007 = vsub.f32 %v403, %v1006
        %1008 = vmatpush2.xpose.msra.mxu0 %v1007
        %1009 = vmatprep.subr.mxu0 0.0
        %v1010 = vand.u32 %v400, 4294901760
        %v1011 = vsub.f32 %v400, %v1010
        %1012 = vmatpush2.xpose.msra.mxu0 %v1011
        %1013 = vmatprep.subr.mxu0 0.0
        %v1014 = vand.u32 %v397, 4294901760
        %v1015 = vsub.f32 %v397, %v1014
        %1016 = vmatpush2.xpose.msra.mxu0 %v1015
        %1017 = vmatprep.subr.mxu0 0.0
        %v1018 = vand.u32 %v394, 4294901760
        %v1019 = vsub.f32 %v394, %v1018
        %1020 = vmatpush2.xpose.msra.mxu0 %v1019
        %1021 = vmatprep.subr.mxu0 0.0
        %v1022 = vand.u32 %v391, 4294901760
        %v1023 = vsub.f32 %v391, %v1022
        %1024 = vmatpush2.xpose.msra.mxu0 %v1023
        %1025 = vmatprep.subr.mxu0 0.0
        %v1026 = vand.u32 %v388, 4294901760
        %v1027 = vsub.f32 %v388, %v1026
        %1028 = vmatpush2.xpose.msra.mxu0 %v1027
        %1029 = vmatprep.mubr.f32.mxu0 0.0
        %v1030 = vand.u32 %v316, 4294901760
        %v1031 = vsub.f32 %v316, %v1030
        %1032 = vmatmul.mubr.f32.gmra.mxu0 %v1031
        %v1033 = vpop.f32.mrf.mxu0
        %v1034 = vadd.f32 %v848, %v1033
        %v1035 = vpop.f32.mrf.mxu0
        %v1036 = vadd.f32 %v850, %v1035
        %1037 = vmatprep.mubr.f32.mxu0 0.0
        %v1038 = vand.u32 %v319, 4294901760
        %v1039 = vsub.f32 %v319, %v1038
        %1040 = vmatmul.mubr.f32.gmra.mxu0 %v1039
        %v1041 = vpop.f32.mrf.mxu0
        %v1042 = vadd.f32 %v855, %v1041
        %v1043 = vpop.f32.mrf.mxu0
        %v1044 = vadd.f32 %v857, %v1043
        %1045 = vmatprep.mubr.f32.mxu0 0.0
        %v1046 = vand.u32 %v322, 4294901760
        %v1047 = vsub.f32 %v322, %v1046
        %1048 = vmatmul.mubr.f32.gmra.mxu0 %v1047
        %v1049 = vpop.f32.mrf.mxu0
        %v1050 = vadd.f32 %v862, %v1049
        %v1051 = vpop.f32.mrf.mxu0
        %v1052 = vadd.f32 %v864, %v1051
        %1053 = vmatprep.mubr.f32.mxu0 0.0
        %v1054 = vand.u32 %v325, 4294901760
        %v1055 = vsub.f32 %v325, %v1054
        %1056 = vmatmul.mubr.f32.gmra.mxu0 %v1055
        %v1057 = vpop.f32.mrf.mxu0
        %v1058 = vadd.f32 %v869, %v1057
        %v1059 = vpop.f32.mrf.mxu0
        %v1060 = vadd.f32 %v871, %v1059
        %1061 = vmatprep.mubr.f32.mxu0 0.0
        %v1062 = vand.u32 %v328, 4294901760
        %v1063 = vsub.f32 %v328, %v1062
        %1064 = vmatmul.mubr.f32.gmra.mxu0 %v1063
        %v1065 = vpop.f32.mrf.mxu0
        %v1066 = vadd.f32 %v876, %v1065
        %v1067 = vpop.f32.mrf.mxu0
        %v1068 = vadd.f32 %v878, %v1067
        %1069 = vmatprep.mubr.f32.mxu0 0.0
        %v1070 = vand.u32 %v331, 4294901760
        %v1071 = vsub.f32 %v331, %v1070
        %1072 = vmatmul.mubr.f32.gmra.mxu0 %v1071
        %v1073 = vpop.f32.mrf.mxu0
        %v1074 = vadd.f32 %v883, %v1073
        %v1075 = vpop.f32.mrf.mxu0
        %v1076 = vadd.f32 %v885, %v1075
        %1077 = vmatprep.mubr.f32.mxu0 0.0
        %v1078 = vand.u32 %v334, 4294901760
        %v1079 = vsub.f32 %v334, %v1078
        %1080 = vmatmul.mubr.f32.gmra.mxu0 %v1079
        %v1081 = vpop.f32.mrf.mxu0
        %v1082 = vadd.f32 %v890, %v1081
        %v1083 = vpop.f32.mrf.mxu0
        %v1084 = vadd.f32 %v892, %v1083
        %1085 = vmatprep.mubr.f32.mxu0 0.0
        %v1086 = vand.u32 %v337, 4294901760
        %v1087 = vsub.f32 %v337, %v1086
        %1088 = vmatmul.mubr.f32.gmra.mxu0 %v1087
        %v1089 = vpop.f32.mrf.mxu0
        %v1090 = vadd.f32 %v897, %v1089
        %v1091 = vpop.f32.mrf.mxu0
        %v1092 = vadd.f32 %v899, %v1091
        %1093 = vdwg.mxu0
        %1094 = vmatprep.subr.mxu0 0.0
        %v1095 = vand.u32 %v385, 4294901760
        %1096 = vmatpush1.xpose.msra.mxu0 %v1095
        %1097 = vmatprep.subr.mxu0 0.0
        %v1098 = vand.u32 %v382, 4294901760
        %1099 = vmatpush1.xpose.msra.mxu0 %v1098
        %1100 = vmatprep.subr.mxu0 0.0
        %v1101 = vand.u32 %v379, 4294901760
        %1102 = vmatpush1.xpose.msra.mxu0 %v1101
        %1103 = vmatprep.subr.mxu0 0.0
        %v1104 = vand.u32 %v376, 4294901760
        %1105 = vmatpush1.xpose.msra.mxu0 %v1104
        %1106 = vmatprep.subr.mxu0 0.0
        %v1107 = vand.u32 %v373, 4294901760
        %1108 = vmatpush1.xpose.msra.mxu0 %v1107
        %1109 = vmatprep.subr.mxu0 0.0
        %v1110 = vand.u32 %v370, 4294901760
        %1111 = vmatpush1.xpose.msra.mxu0 %v1110
        %1112 = vmatprep.subr.mxu0 0.0
        %v1113 = vand.u32 %v367, 4294901760
        %1114 = vmatpush1.xpose.msra.mxu0 %v1113
        %1115 = vmatprep.subr.mxu0 0.0
        %v1116 = vand.u32 %v364, 4294901760
        %1117 = vmatpush1.xpose.msra.mxu0 %v1116
        %1118 = vmatprep.subr.mxu0 0.0
        %v1119 = vand.u32 %v361, 4294901760
        %1120 = vmatpush1.xpose.msra.mxu0 %v1119
        %1121 = vmatprep.subr.mxu0 0.0
        %v1122 = vand.u32 %v358, 4294901760
        %1123 = vmatpush1.xpose.msra.mxu0 %v1122
        %1124 = vmatprep.subr.mxu0 0.0
        %v1125 = vand.u32 %v355, 4294901760
        %1126 = vmatpush1.xpose.msra.mxu0 %v1125
        %1127 = vmatprep.subr.mxu0 0.0
        %v1128 = vand.u32 %v352, 4294901760
        %1129 = vmatpush1.xpose.msra.mxu0 %v1128
        %1130 = vmatprep.subr.mxu0 0.0
        %v1131 = vand.u32 %v349, 4294901760
        %1132 = vmatpush1.xpose.msra.mxu0 %v1131
        %1133 = vmatprep.subr.mxu0 0.0
        %v1134 = vand.u32 %v346, 4294901760
        %1135 = vmatpush1.xpose.msra.mxu0 %v1134
        %1136 = vmatprep.subr.mxu0 0.0
        %v1137 = vand.u32 %v343, 4294901760
        %1138 = vmatpush1.xpose.msra.mxu0 %v1137
        %1139 = vmatprep.subr.mxu0 0.0
        %v1140 = vand.u32 %v340, 4294901760
        %1141 = vmatpush1.xpose.msra.mxu0 %v1140
        %1142 = vmatprep.subr.mxu0 0.0
        %v1143 = vand.u32 %v433, 4294901760
        %1144 = vmatpush2.xpose.msra.mxu0 %v1143
        %1145 = vmatprep.subr.mxu0 0.0
        %v1146 = vand.u32 %v430, 4294901760
        %1147 = vmatpush2.xpose.msra.mxu0 %v1146
        %1148 = vmatprep.subr.mxu0 0.0
        %v1149 = vand.u32 %v427, 4294901760
        %1150 = vmatpush2.xpose.msra.mxu0 %v1149
        %1151 = vmatprep.subr.mxu0 0.0
        %v1152 = vand.u32 %v424, 4294901760
        %1153 = vmatpush2.xpose.msra.mxu0 %v1152
        %1154 = vmatprep.subr.mxu0 0.0
        %v1155 = vand.u32 %v421, 4294901760
        %1156 = vmatpush2.xpose.msra.mxu0 %v1155
        %1157 = vmatprep.subr.mxu0 0.0
        %v1158 = vand.u32 %v418, 4294901760
        %1159 = vmatpush2.xpose.msra.mxu0 %v1158
        %1160 = vmatprep.subr.mxu0 0.0
        %v1161 = vand.u32 %v415, 4294901760
        %1162 = vmatpush2.xpose.msra.mxu0 %v1161
        %1163 = vmatprep.subr.mxu0 0.0
        %v1164 = vand.u32 %v412, 4294901760
        %1165 = vmatpush2.xpose.msra.mxu0 %v1164
        %1166 = vmatprep.subr.mxu0 0.0
        %v1167 = vand.u32 %v409, 4294901760
        %1168 = vmatpush2.xpose.msra.mxu0 %v1167
        %1169 = vmatprep.subr.mxu0 0.0
        %v1170 = vand.u32 %v406, 4294901760
        %1171 = vmatpush2.xpose.msra.mxu0 %v1170
        %1172 = vmatprep.subr.mxu0 0.0
        %v1173 = vand.u32 %v403, 4294901760
        %1174 = vmatpush2.xpose.msra.mxu0 %v1173
        %1175 = vmatprep.subr.mxu0 0.0
        %v1176 = vand.u32 %v400, 4294901760
        %1177 = vmatpush2.xpose.msra.mxu0 %v1176
        %1178 = vmatprep.subr.mxu0 0.0
        %v1179 = vand.u32 %v397, 4294901760
        %1180 = vmatpush2.xpose.msra.mxu0 %v1179
        %1181 = vmatprep.subr.mxu0 0.0
        %v1182 = vand.u32 %v394, 4294901760
        %1183 = vmatpush2.xpose.msra.mxu0 %v1182
        %1184 = vmatprep.subr.mxu0 0.0
        %v1185 = vand.u32 %v391, 4294901760
        %1186 = vmatpush2.xpose.msra.mxu0 %v1185
        %1187 = vmatprep.subr.mxu0 0.0
        %v1188 = vand.u32 %v388, 4294901760
        %1189 = vmatpush2.xpose.msra.mxu0 %v1188
        %1190 = vmatprep.mubr.f32.mxu0 0.0
        %v1191 = vand.u32 %v316, 4294901760
        %v1192 = vsub.f32 %v316, %v1191
        %v1193 = vand.u32 %v1192, 4294901760
        %1194 = vmatmul.mubr.f32.gmra.mxu0 %v1193
        %v1195 = vpop.f32.mrf.mxu0
        %v1196 = vadd.f32 %v1034, %v1195
        %v1197 = vpop.f32.mrf.mxu0
        %v1198 = vadd.f32 %v1036, %v1197
        %1199 = vmatprep.mubr.f32.mxu0 0.0
        %v1200 = vand.u32 %v319, 4294901760
        %v1201 = vsub.f32 %v319, %v1200
        %v1202 = vand.u32 %v1201, 4294901760
        %1203 = vmatmul.mubr.f32.gmra.mxu0 %v1202
        %v1204 = vpop.f32.mrf.mxu0
        %v1205 = vadd.f32 %v1042, %v1204
        %v1206 = vpop.f32.mrf.mxu0
        %v1207 = vadd.f32 %v1044, %v1206
        %1208 = vmatprep.mubr.f32.mxu0 0.0
        %v1209 = vand.u32 %v322, 4294901760
        %v1210 = vsub.f32 %v322, %v1209
        %v1211 = vand.u32 %v1210, 4294901760
        %1212 = vmatmul.mubr.f32.gmra.mxu0 %v1211
        %v1213 = vpop.f32.mrf.mxu0
        %v1214 = vadd.f32 %v1050, %v1213
        %v1215 = vpop.f32.mrf.mxu0
        %v1216 = vadd.f32 %v1052, %v1215
        %1217 = vmatprep.mubr.f32.mxu0 0.0
        %v1218 = vand.u32 %v325, 4294901760
        %v1219 = vsub.f32 %v325, %v1218
        %v1220 = vand.u32 %v1219, 4294901760
        %1221 = vmatmul.mubr.f32.gmra.mxu0 %v1220
        %v1222 = vpop.f32.mrf.mxu0
        %v1223 = vadd.f32 %v1058, %v1222
        %v1224 = vpop.f32.mrf.mxu0
        %v1225 = vadd.f32 %v1060, %v1224
        %1226 = vmatprep.mubr.f32.mxu0 0.0
        %v1227 = vand.u32 %v328, 4294901760
        %v1228 = vsub.f32 %v328, %v1227
        %v1229 = vand.u32 %v1228, 4294901760
        %1230 = vmatmul.mubr.f32.gmra.mxu0 %v1229
        %v1231 = vpop.f32.mrf.mxu0
        %v1232 = vadd.f32 %v1066, %v1231
        %v1233 = vpop.f32.mrf.mxu0
        %v1234 = vadd.f32 %v1068, %v1233
        %1235 = vmatprep.mubr.f32.mxu0 0.0
        %v1236 = vand.u32 %v331, 4294901760
        %v1237 = vsub.f32 %v331, %v1236
        %v1238 = vand.u32 %v1237, 4294901760
        %1239 = vmatmul.mubr.f32.gmra.mxu0 %v1238
        %v1240 = vpop.f32.mrf.mxu0
        %v1241 = vadd.f32 %v1074, %v1240
        %v1242 = vpop.f32.mrf.mxu0
        %v1243 = vadd.f32 %v1076, %v1242
        %1244 = vmatprep.mubr.f32.mxu0 0.0
        %v1245 = vand.u32 %v334, 4294901760
        %v1246 = vsub.f32 %v334, %v1245
        %v1247 = vand.u32 %v1246, 4294901760
        %1248 = vmatmul.mubr.f32.gmra.mxu0 %v1247
        %v1249 = vpop.f32.mrf.mxu0
        %v1250 = vadd.f32 %v1082, %v1249
        %v1251 = vpop.f32.mrf.mxu0
        %v1252 = vadd.f32 %v1084, %v1251
        %1253 = vmatprep.mubr.f32.mxu0 0.0
        %v1254 = vand.u32 %v337, 4294901760
        %v1255 = vsub.f32 %v337, %v1254
        %v1256 = vand.u32 %v1255, 4294901760
        %1257 = vmatmul.mubr.f32.gmra.mxu0 %v1256
        %v1258 = vpop.f32.mrf.mxu0
        %v1259 = vadd.f32 %v1090, %v1258
        %v1260 = vpop.f32.mrf.mxu0
        %v1261 = vadd.f32 %v1092, %v1260
        %1262 = vdwg.mxu0
        %1263 = vmatprep.subr.mxu0 0.0
        %v1264 = vand.u32 %v385, 4294901760
        %v1265 = vsub.f32 %v385, %v1264
        %v1266 = vand.u32 %v1265, 4294901760
        %1267 = vmatpush1.xpose.msra.mxu0 %v1266
        %1268 = vmatprep.subr.mxu0 0.0
        %v1269 = vand.u32 %v382, 4294901760
        %v1270 = vsub.f32 %v382, %v1269
        %v1271 = vand.u32 %v1270, 4294901760
        %1272 = vmatpush1.xpose.msra.mxu0 %v1271
        %1273 = vmatprep.subr.mxu0 0.0
        %v1274 = vand.u32 %v379, 4294901760
        %v1275 = vsub.f32 %v379, %v1274
        %v1276 = vand.u32 %v1275, 4294901760
        %1277 = vmatpush1.xpose.msra.mxu0 %v1276
        %1278 = vmatprep.subr.mxu0 0.0
        %v1279 = vand.u32 %v376, 4294901760
        %v1280 = vsub.f32 %v376, %v1279
        %v1281 = vand.u32 %v1280, 4294901760
        %1282 = vmatpush1.xpose.msra.mxu0 %v1281
        %1283 = vmatprep.subr.mxu0 0.0
        %v1284 = vand.u32 %v373, 4294901760
        %v1285 = vsub.f32 %v373, %v1284
        %v1286 = vand.u32 %v1285, 4294901760
        %1287 = vmatpush1.xpose.msra.mxu0 %v1286
        %1288 = vmatprep.subr.mxu0 0.0
        %v1289 = vand.u32 %v370, 4294901760
        %v1290 = vsub.f32 %v370, %v1289
        %v1291 = vand.u32 %v1290, 4294901760
        %1292 = vmatpush1.xpose.msra.mxu0 %v1291
        %1293 = vmatprep.subr.mxu0 0.0
        %v1294 = vand.u32 %v367, 4294901760
        %v1295 = vsub.f32 %v367, %v1294
        %v1296 = vand.u32 %v1295, 4294901760
        %1297 = vmatpush1.xpose.msra.mxu0 %v1296
        %1298 = vmatprep.subr.mxu0 0.0
        %v1299 = vand.u32 %v364, 4294901760
        %v1300 = vsub.f32 %v364, %v1299
        %v1301 = vand.u32 %v1300, 4294901760
        %1302 = vmatpush1.xpose.msra.mxu0 %v1301
        %1303 = vmatprep.subr.mxu0 0.0
        %v1304 = vand.u32 %v361, 4294901760
        %v1305 = vsub.f32 %v361, %v1304
        %v1306 = vand.u32 %v1305, 4294901760
        %1307 = vmatpush1.xpose.msra.mxu0 %v1306
        %1308 = vmatprep.subr.mxu0 0.0
        %v1309 = vand.u32 %v358, 4294901760
        %v1310 = vsub.f32 %v358, %v1309
        %v1311 = vand.u32 %v1310, 4294901760
        %1312 = vmatpush1.xpose.msra.mxu0 %v1311
        %1313 = vmatprep.subr.mxu0 0.0
        %v1314 = vand.u32 %v355, 4294901760
        %v1315 = vsub.f32 %v355, %v1314
        %v1316 = vand.u32 %v1315, 4294901760
        %1317 = vmatpush1.xpose.msra.mxu0 %v1316
        %1318 = vmatprep.subr.mxu0 0.0
        %v1319 = vand.u32 %v352, 4294901760
        %v1320 = vsub.f32 %v352, %v1319
        %v1321 = vand.u32 %v1320, 4294901760
        %1322 = vmatpush1.xpose.msra.mxu0 %v1321
        %1323 = vmatprep.subr.mxu0 0.0
        %v1324 = vand.u32 %v349, 4294901760
        %v1325 = vsub.f32 %v349, %v1324
        %v1326 = vand.u32 %v1325, 4294901760
        %1327 = vmatpush1.xpose.msra.mxu0 %v1326
        %1328 = vmatprep.subr.mxu0 0.0
        %v1329 = vand.u32 %v346, 4294901760
        %v1330 = vsub.f32 %v346, %v1329
        %v1331 = vand.u32 %v1330, 4294901760
        %1332 = vmatpush1.xpose.msra.mxu0 %v1331
        %1333 = vmatprep.subr.mxu0 0.0
        %v1334 = vand.u32 %v343, 4294901760
        %v1335 = vsub.f32 %v343, %v1334
        %v1336 = vand.u32 %v1335, 4294901760
        %1337 = vmatpush1.xpose.msra.mxu0 %v1336
        %1338 = vmatprep.subr.mxu0 0.0
        %v1339 = vand.u32 %v340, 4294901760
        %v1340 = vsub.f32 %v340, %v1339
        %v1341 = vand.u32 %v1340, 4294901760
        %1342 = vmatpush1.xpose.msra.mxu0 %v1341
        %1343 = vmatprep.subr.mxu0 0.0
        %v1344 = vand.u32 %v433, 4294901760
        %v1345 = vsub.f32 %v433, %v1344
        %v1346 = vand.u32 %v1345, 4294901760
        %1347 = vmatpush2.xpose.msra.mxu0 %v1346
        %1348 = vmatprep.subr.mxu0 0.0
        %v1349 = vand.u32 %v430, 4294901760
        %v1350 = vsub.f32 %v430, %v1349
        %v1351 = vand.u32 %v1350, 4294901760
        %1352 = vmatpush2.xpose.msra.mxu0 %v1351
        %1353 = vmatprep.subr.mxu0 0.0
        %v1354 = vand.u32 %v427, 4294901760
        %v1355 = vsub.f32 %v427, %v1354
        %v1356 = vand.u32 %v1355, 4294901760
        %1357 = vmatpush2.xpose.msra.mxu0 %v1356
        %1358 = vmatprep.subr.mxu0 0.0
        %v1359 = vand.u32 %v424, 4294901760
        %v1360 = vsub.f32 %v424, %v1359
        %v1361 = vand.u32 %v1360, 4294901760
        %1362 = vmatpush2.xpose.msra.mxu0 %v1361
        %1363 = vmatprep.subr.mxu0 0.0
        %v1364 = vand.u32 %v421, 4294901760
        %v1365 = vsub.f32 %v421, %v1364
        %v1366 = vand.u32 %v1365, 4294901760
        %1367 = vmatpush2.xpose.msra.mxu0 %v1366
        %1368 = vmatprep.subr.mxu0 0.0
        %v1369 = vand.u32 %v418, 4294901760
        %v1370 = vsub.f32 %v418, %v1369
        %v1371 = vand.u32 %v1370, 4294901760
        %1372 = vmatpush2.xpose.msra.mxu0 %v1371
        %1373 = vmatprep.subr.mxu0 0.0
        %v1374 = vand.u32 %v415, 4294901760
        %v1375 = vsub.f32 %v415, %v1374
        %v1376 = vand.u32 %v1375, 4294901760
        %1377 = vmatpush2.xpose.msra.mxu0 %v1376
        %1378 = vmatprep.subr.mxu0 0.0
        %v1379 = vand.u32 %v412, 4294901760
        %v1380 = vsub.f32 %v412, %v1379
        %v1381 = vand.u32 %v1380, 4294901760
        %1382 = vmatpush2.xpose.msra.mxu0 %v1381
        %1383 = vmatprep.subr.mxu0 0.0
        %v1384 = vand.u32 %v409, 4294901760
        %v1385 = vsub.f32 %v409, %v1384
        %v1386 = vand.u32 %v1385, 4294901760
        %1387 = vmatpush2.xpose.msra.mxu0 %v1386
        %1388 = vmatprep.subr.mxu0 0.0
        %v1389 = vand.u32 %v406, 4294901760
        %v1390 = vsub.f32 %v406, %v1389
        %v1391 = vand.u32 %v1390, 4294901760
        %1392 = vmatpush2.xpose.msra.mxu0 %v1391
        %1393 = vmatprep.subr.mxu0 0.0
        %v1394 = vand.u32 %v403, 4294901760
        %v1395 = vsub.f32 %v403, %v1394
        %v1396 = vand.u32 %v1395, 4294901760
        %1397 = vmatpush2.xpose.msra.mxu0 %v1396
        %1398 = vmatprep.subr.mxu0 0.0
        %v1399 = vand.u32 %v400, 4294901760
        %v1400 = vsub.f32 %v400, %v1399
        %v1401 = vand.u32 %v1400, 4294901760
        %1402 = vmatpush2.xpose.msra.mxu0 %v1401
        %1403 = vmatprep.subr.mxu0 0.0
        %v1404 = vand.u32 %v397, 4294901760
        %v1405 = vsub.f32 %v397, %v1404
        %v1406 = vand.u32 %v1405, 4294901760
        %1407 = vmatpush2.xpose.msra.mxu0 %v1406
        %1408 = vmatprep.subr.mxu0 0.0
        %v1409 = vand.u32 %v394, 4294901760
        %v1410 = vsub.f32 %v394, %v1409
        %v1411 = vand.u32 %v1410, 4294901760
        %1412 = vmatpush2.xpose.msra.mxu0 %v1411
        %1413 = vmatprep.subr.mxu0 0.0
        %v1414 = vand.u32 %v391, 4294901760
        %v1415 = vsub.f32 %v391, %v1414
        %v1416 = vand.u32 %v1415, 4294901760
        %1417 = vmatpush2.xpose.msra.mxu0 %v1416
        %1418 = vmatprep.subr.mxu0 0.0
        %v1419 = vand.u32 %v388, 4294901760
        %v1420 = vsub.f32 %v388, %v1419
        %v1421 = vand.u32 %v1420, 4294901760
        %1422 = vmatpush2.xpose.msra.mxu0 %v1421
        %1423 = vmatprep.mubr.f32.mxu0 0.0
        %v1424 = vand.u32 %v316, 4294901760
        %1425 = vmatmul.mubr.f32.gmra.mxu0 %v1424
        %v1426 = vpop.f32.mrf.mxu0
        %v1427 = vadd.f32 %v1196, %v1426
        %v1428 = vpop.f32.mrf.mxu0
        %v1429 = vadd.f32 %v1198, %v1428
        %1430 = vmatprep.mubr.f32.mxu0 0.0
        %v1431 = vand.u32 %v319, 4294901760
        %1432 = vmatmul.mubr.f32.gmra.mxu0 %v1431
        %v1433 = vpop.f32.mrf.mxu0
        %v1434 = vadd.f32 %v1205, %v1433
        %v1435 = vpop.f32.mrf.mxu0
        %v1436 = vadd.f32 %v1207, %v1435
        %1437 = vmatprep.mubr.f32.mxu0 0.0
        %v1438 = vand.u32 %v322, 4294901760
        %1439 = vmatmul.mubr.f32.gmra.mxu0 %v1438
        %v1440 = vpop.f32.mrf.mxu0
        %v1441 = vadd.f32 %v1214, %v1440
        %v1442 = vpop.f32.mrf.mxu0
        %v1443 = vadd.f32 %v1216, %v1442
        %1444 = vmatprep.mubr.f32.mxu0 0.0
        %v1445 = vand.u32 %v325, 4294901760
        %1446 = vmatmul.mubr.f32.gmra.mxu0 %v1445
        %v1447 = vpop.f32.mrf.mxu0
        %v1448 = vadd.f32 %v1223, %v1447
        %v1449 = vpop.f32.mrf.mxu0
        %v1450 = vadd.f32 %v1225, %v1449
        %1451 = vmatprep.mubr.f32.mxu0 0.0
        %v1452 = vand.u32 %v328, 4294901760
        %1453 = vmatmul.mubr.f32.gmra.mxu0 %v1452
        %v1454 = vpop.f32.mrf.mxu0
        %v1455 = vadd.f32 %v1232, %v1454
        %v1456 = vpop.f32.mrf.mxu0
        %v1457 = vadd.f32 %v1234, %v1456
        %1458 = vmatprep.mubr.f32.mxu0 0.0
        %v1459 = vand.u32 %v331, 4294901760
        %1460 = vmatmul.mubr.f32.gmra.mxu0 %v1459
        %v1461 = vpop.f32.mrf.mxu0
        %v1462 = vadd.f32 %v1241, %v1461
        %v1463 = vpop.f32.mrf.mxu0
        %v1464 = vadd.f32 %v1243, %v1463
        %1465 = vmatprep.mubr.f32.mxu0 0.0
        %v1466 = vand.u32 %v334, 4294901760
        %1467 = vmatmul.mubr.f32.gmra.mxu0 %v1466
        %v1468 = vpop.f32.mrf.mxu0
        %v1469 = vadd.f32 %v1250, %v1468
        %v1470 = vpop.f32.mrf.mxu0
        %v1471 = vadd.f32 %v1252, %v1470
        %1472 = vmatprep.mubr.f32.mxu0 0.0
        %v1473 = vand.u32 %v337, 4294901760
        %1474 = vmatmul.mubr.f32.gmra.mxu0 %v1473
        %v1475 = vpop.f32.mrf.mxu0
        %v1476 = vadd.f32 %v1259, %v1475
        %v1477 = vpop.f32.mrf.mxu0
        %v1478 = vadd.f32 %v1261, %v1477
        %1479 = vdwg.mxu0
        %1480 = vmatprep.subr.mxu0 0.0
        %v1481 = vand.u32 %v385, 4294901760
        %1482 = vmatpush1.xpose.msra.mxu0 %v1481
        %1483 = vmatprep.subr.mxu0 0.0
        %v1484 = vand.u32 %v382, 4294901760
        %1485 = vmatpush1.xpose.msra.mxu0 %v1484
        %1486 = vmatprep.subr.mxu0 0.0
        %v1487 = vand.u32 %v379, 4294901760
        %1488 = vmatpush1.xpose.msra.mxu0 %v1487
        %1489 = vmatprep.subr.mxu0 0.0
        %v1490 = vand.u32 %v376, 4294901760
        %1491 = vmatpush1.xpose.msra.mxu0 %v1490
        %1492 = vmatprep.subr.mxu0 0.0
        %v1493 = vand.u32 %v373, 4294901760
        %1494 = vmatpush1.xpose.msra.mxu0 %v1493
        %1495 = vmatprep.subr.mxu0 0.0
        %v1496 = vand.u32 %v370, 4294901760
        %1497 = vmatpush1.xpose.msra.mxu0 %v1496
        %1498 = vmatprep.subr.mxu0 0.0
        %v1499 = vand.u32 %v367, 4294901760
        %1500 = vmatpush1.xpose.msra.mxu0 %v1499
        %1501 = vmatprep.subr.mxu0 0.0
        %v1502 = vand.u32 %v364, 4294901760
        %1503 = vmatpush1.xpose.msra.mxu0 %v1502
        %1504 = vmatprep.subr.mxu0 0.0
        %v1505 = vand.u32 %v361, 4294901760
        %1506 = vmatpush1.xpose.msra.mxu0 %v1505
        %1507 = vmatprep.subr.mxu0 0.0
        %v1508 = vand.u32 %v358, 4294901760
        %1509 = vmatpush1.xpose.msra.mxu0 %v1508
        %1510 = vmatprep.subr.mxu0 0.0
        %v1511 = vand.u32 %v355, 4294901760
        %1512 = vmatpush1.xpose.msra.mxu0 %v1511
        %1513 = vmatprep.subr.mxu0 0.0
        %v1514 = vand.u32 %v352, 4294901760
        %1515 = vmatpush1.xpose.msra.mxu0 %v1514
        %1516 = vmatprep.subr.mxu0 0.0
        %v1517 = vand.u32 %v349, 4294901760
        %1518 = vmatpush1.xpose.msra.mxu0 %v1517
        %1519 = vmatprep.subr.mxu0 0.0
        %v1520 = vand.u32 %v346, 4294901760
        %1521 = vmatpush1.xpose.msra.mxu0 %v1520
        %1522 = vmatprep.subr.mxu0 0.0
        %v1523 = vand.u32 %v343, 4294901760
        %1524 = vmatpush1.xpose.msra.mxu0 %v1523
        %1525 = vmatprep.subr.mxu0 0.0
        %v1526 = vand.u32 %v340, 4294901760
        %1527 = vmatpush1.xpose.msra.mxu0 %v1526
        %1528 = vmatprep.subr.mxu0 0.0
        %v1529 = vand.u32 %v433, 4294901760
        %1530 = vmatpush2.xpose.msra.mxu0 %v1529
        %1531 = vmatprep.subr.mxu0 0.0
        %v1532 = vand.u32 %v430, 4294901760
        %1533 = vmatpush2.xpose.msra.mxu0 %v1532
        %1534 = vmatprep.subr.mxu0 0.0
        %v1535 = vand.u32 %v427, 4294901760
        %1536 = vmatpush2.xpose.msra.mxu0 %v1535
        %1537 = vmatprep.subr.mxu0 0.0
        %v1538 = vand.u32 %v424, 4294901760
        %1539 = vmatpush2.xpose.msra.mxu0 %v1538
        %1540 = vmatprep.subr.mxu0 0.0
        %v1541 = vand.u32 %v421, 4294901760
        %1542 = vmatpush2.xpose.msra.mxu0 %v1541
        %1543 = vmatprep.subr.mxu0 0.0
        %v1544 = vand.u32 %v418, 4294901760
        %1545 = vmatpush2.xpose.msra.mxu0 %v1544
        %1546 = vmatprep.subr.mxu0 0.0
        %v1547 = vand.u32 %v415, 4294901760
        %1548 = vmatpush2.xpose.msra.mxu0 %v1547
        %1549 = vmatprep.subr.mxu0 0.0
        %v1550 = vand.u32 %v412, 4294901760
        %1551 = vmatpush2.xpose.msra.mxu0 %v1550
        %1552 = vmatprep.subr.mxu0 0.0
        %v1553 = vand.u32 %v409, 4294901760
        %1554 = vmatpush2.xpose.msra.mxu0 %v1553
        %1555 = vmatprep.subr.mxu0 0.0
        %v1556 = vand.u32 %v406, 4294901760
        %1557 = vmatpush2.xpose.msra.mxu0 %v1556
        %1558 = vmatprep.subr.mxu0 0.0
        %v1559 = vand.u32 %v403, 4294901760
        %1560 = vmatpush2.xpose.msra.mxu0 %v1559
        %1561 = vmatprep.subr.mxu0 0.0
        %v1562 = vand.u32 %v400, 4294901760
        %1563 = vmatpush2.xpose.msra.mxu0 %v1562
        %1564 = vmatprep.subr.mxu0 0.0
        %v1565 = vand.u32 %v397, 4294901760
        %1566 = vmatpush2.xpose.msra.mxu0 %v1565
        %1567 = vmatprep.subr.mxu0 0.0
        %v1568 = vand.u32 %v394, 4294901760
        %1569 = vmatpush2.xpose.msra.mxu0 %v1568
        %1570 = vmatprep.subr.mxu0 0.0
        %v1571 = vand.u32 %v391, 4294901760
        %1572 = vmatpush2.xpose.msra.mxu0 %v1571
        %1573 = vmatprep.subr.mxu0 0.0
        %v1574 = vand.u32 %v388, 4294901760
        %1575 = vmatpush2.xpose.msra.mxu0 %v1574
        %1576 = vmatprep.mubr.f32.mxu0 0.0
        %v1577 = vand.u32 %v316, 4294901760
        %1578 = vmatmul.mubr.f32.gmra.mxu0 %v1577
        %v1579 = vpop.f32.mrf.mxu0
        %v1580 = vadd.f32 %v1427, %v1579
        %v1581 = vpop.f32.mrf.mxu0
        %v1582 = vadd.f32 %v1429, %v1581
        %1583 = vmatprep.mubr.f32.mxu0 0.0
        %v1584 = vand.u32 %v319, 4294901760
        %1585 = vmatmul.mubr.f32.gmra.mxu0 %v1584
        %v1586 = vpop.f32.mrf.mxu0
        %v1587 = vadd.f32 %v1434, %v1586
        %v1588 = vpop.f32.mrf.mxu0
        %v1589 = vadd.f32 %v1436, %v1588
        %1590 = vmatprep.mubr.f32.mxu0 0.0
        %v1591 = vand.u32 %v322, 4294901760
        %1592 = vmatmul.mubr.f32.gmra.mxu0 %v1591
        %v1593 = vpop.f32.mrf.mxu0
        %v1594 = vadd.f32 %v1441, %v1593
        %v1595 = vpop.f32.mrf.mxu0
        %v1596 = vadd.f32 %v1443, %v1595
        %1597 = vmatprep.mubr.f32.mxu0 0.0
        %v1598 = vand.u32 %v325, 4294901760
        %1599 = vmatmul.mubr.f32.gmra.mxu0 %v1598
        %v1600 = vpop.f32.mrf.mxu0
        %v1601 = vadd.f32 %v1448, %v1600
        %v1602 = vpop.f32.mrf.mxu0
        %v1603 = vadd.f32 %v1450, %v1602
        %1604 = vmatprep.mubr.f32.mxu0 0.0
        %v1605 = vand.u32 %v328, 4294901760
        %1606 = vmatmul.mubr.f32.gmra.mxu0 %v1605
        %v1607 = vpop.f32.mrf.mxu0
        %v1608 = vadd.f32 %v1455, %v1607
        %v1609 = vpop.f32.mrf.mxu0
        %v1610 = vadd.f32 %v1457, %v1609
        %1611 = vmatprep.mubr.f32.mxu0 0.0
        %v1612 = vand.u32 %v331, 4294901760
        %1613 = vmatmul.mubr.f32.gmra.mxu0 %v1612
        %v1614 = vpop.f32.mrf.mxu0
        %v1615 = vadd.f32 %v1462, %v1614
        %v1616 = vpop.f32.mrf.mxu0
        %v1617 = vadd.f32 %v1464, %v1616
        %1618 = vmatprep.mubr.f32.mxu0 0.0
        %v1619 = vand.u32 %v334, 4294901760
        %1620 = vmatmul.mubr.f32.gmra.mxu0 %v1619
        %v1621 = vpop.f32.mrf.mxu0
        %v1622 = vadd.f32 %v1469, %v1621
        %v1623 = vpop.f32.mrf.mxu0
        %v1624 = vadd.f32 %v1471, %v1623
        %1625 = vmatprep.mubr.f32.mxu0 0.0
        %v1626 = vand.u32 %v337, 4294901760
        %1627 = vmatmul.mubr.f32.gmra.mxu0 %v1626
        %v1628 = vpop.f32.mrf.mxu0
        %v1629 = vadd.f32 %v1476, %v1628
        %v1630 = vpop.f32.mrf.mxu0
        %v1631 = vadd.f32 %v1478, %v1630
        %1632 = vdwg.mxu0
        %v1633 = vmax.f32 %v1580, 0.0
        %v1634 = vmax.f32 %v1582, 0.0
        %v1635 = vmax.f32 %v1587, 0.0
        %v1636 = vmax.f32 %v1589, 0.0
        %v1637 = vmax.f32 %v1594, 0.0
        %v1638 = vmax.f32 %v1596, 0.0
        %v1639 = vmax.f32 %v1601, 0.0
        %v1640 = vmax.f32 %v1603, 0.0
        %v1641 = vmax.f32 %v1608, 0.0
        %v1642 = vmax.f32 %v1610, 0.0
        %v1643 = vmax.f32 %v1615, 0.0
        %v1644 = vmax.f32 %v1617, 0.0
        %v1645 = vmax.f32 %v1622, 0.0
        %v1646 = vmax.f32 %v1624, 0.0
        %v1647 = vmax.f32 %v1629, 0.0
        %v1648 = vmax.f32 %v1631, 0.0
        %v1649 = vld [vmem:[%s3] sm:$0xff]
        %v1650 = vld [vmem:[%s3 + $0x8] sm:$0xff]
        %v1651 = vld [vmem:[%s3 + $0x10] sm:$0xff]
        %v1652 = vld [vmem:[%s3 + $0x18] sm:$0xff]
        %v1653 = vld [vmem:[%s4] sm:$0xff]
        %v1654 = vld [vmem:[%s4 + $0x8] sm:$0xff]
        %v1655 = vld [vmem:[%s4 + $0x10] sm:$0xff]
        %v1656 = vld [vmem:[%s4 + $0x18] sm:$0xff]
        %1658 = vset.pattern.permute.xlu0 0
        %1659 = vperm.xlu0 %1658, %v1653
        %v1660 = vpop.permute.xlu0 %1659
        %1663 = vset.pattern.permute.xlu0 0
        %1664 = vperm.xlu0 %1663, %v1654
        %v1665 = vpop.permute.xlu0 %1664
        %1668 = vset.pattern.permute.xlu0 0
        %1669 = vperm.xlu0 %1668, %v1655
        %v1670 = vpop.permute.xlu0 %1669
        %1673 = vset.pattern.permute.xlu0 0
        %1674 = vperm.xlu0 %1673, %v1656
        %v1675 = vpop.permute.xlu0 %1674
        %vm1677 = vcmask 523264
        %v1679 = vsel %vm1677, %v1649, 0
        %v1682 = vsel %vm1677, %v1650, 0
        %v1685 = vsel %vm1677, %v1651, 0
        %v1688 = vsel %vm1677, %v1652, 0
        %1690 = vmatprep.subr.mxu0 0.0
        %1691 = vmatpush1.msra.mxu0 0.0
        %1692 = vmatprep.subr.mxu0 0.0
        %1693 = vmatpush1.msra.mxu0 0.0
        %1694 = vmatprep.subr.mxu0 0.0
        %1695 = vmatpush1.msra.mxu0 0.0
        %1696 = vmatprep.subr.mxu0 0.0
        %1697 = vmatpush1.msra.mxu0 0.0
        %1698 = vmatprep.subr.mxu0 0.0
        %1699 = vmatpush1.msra.mxu0 0.0
        %1700 = vmatprep.subr.mxu0 0.0
        %1701 = vmatpush1.msra.mxu0 0.0
        %1702 = vmatprep.subr.mxu0 0.0
        %1703 = vmatpush1.msra.mxu0 0.0
        %1704 = vmatprep.subr.mxu0 0.0
        %1705 = vmatpush1.msra.mxu0 0.0
        %v1706 = vand.u32 %v1648, 4294901760
        %1707 = vmatprep.subr.mxu0 %v1706
        %v1708 = vand.u32 %v1647, 4294901760
        %1709 = vmatpush1.msra.mxu0 %v1708
        %v1710 = vand.u32 %v1646, 4294901760
        %1711 = vmatprep.subr.mxu0 %v1710
        %v1712 = vand.u32 %v1645, 4294901760
        %1713 = vmatpush1.msra.mxu0 %v1712
        %v1714 = vand.u32 %v1644, 4294901760
        %1715 = vmatprep.subr.mxu0 %v1714
        %v1716 = vand.u32 %v1643, 4294901760
        %1717 = vmatpush1.msra.mxu0 %v1716
        %v1718 = vand.u32 %v1642, 4294901760
        %1719 = vmatprep.subr.mxu0 %v1718
        %v1720 = vand.u32 %v1641, 4294901760
        %1721 = vmatpush1.msra.mxu0 %v1720
        %v1722 = vand.u32 %v1640, 4294901760
        %1723 = vmatprep.subr.mxu0 %v1722
        %v1724 = vand.u32 %v1639, 4294901760
        %1725 = vmatpush1.msra.mxu0 %v1724
        %v1726 = vand.u32 %v1638, 4294901760
        %1727 = vmatprep.subr.mxu0 %v1726
        %v1728 = vand.u32 %v1637, 4294901760
        %1729 = vmatpush1.msra.mxu0 %v1728
        %v1730 = vand.u32 %v1636, 4294901760
        %1731 = vmatprep.subr.mxu0 %v1730
        %v1732 = vand.u32 %v1635, 4294901760
        %1733 = vmatpush1.msra.mxu0 %v1732
        %v1734 = vand.u32 %v1634, 4294901760
        %1735 = vmatprep.subr.mxu0 %v1734
        %v1736 = vand.u32 %v1633, 4294901760
        %1737 = vmatpush1.msra.mxu0 %v1736
        %1738 = vmatprep.subr.mxu0 0.0
        %1739 = vmatpush2.msra.mxu0 0.0
        %1740 = vmatprep.subr.mxu0 0.0
        %1741 = vmatpush2.msra.mxu0 0.0
        %1742 = vmatprep.subr.mxu0 0.0
        %1743 = vmatpush2.msra.mxu0 0.0
        %1744 = vmatprep.subr.mxu0 0.0
        %1745 = vmatpush2.msra.mxu0 0.0
        %1746 = vmatprep.subr.mxu0 0.0
        %1747 = vmatpush2.msra.mxu0 0.0
        %1748 = vmatprep.subr.mxu0 0.0
        %1749 = vmatpush2.msra.mxu0 0.0
        %1750 = vmatprep.subr.mxu0 0.0
        %1751 = vmatpush2.msra.mxu0 0.0
        %1752 = vmatprep.subr.mxu0 0.0
        %1753 = vmatpush2.msra.mxu0 0.0
        %1754 = vmatprep.subr.mxu0 0.0
        %1755 = vmatpush2.msra.mxu0 0.0
        %1756 = vmatprep.subr.mxu0 0.0
        %1757 = vmatpush2.msra.mxu0 0.0
        %1758 = vmatprep.subr.mxu0 0.0
        %1759 = vmatpush2.msra.mxu0 0.0
        %1760 = vmatprep.subr.mxu0 0.0
        %1761 = vmatpush2.msra.mxu0 0.0
        %1762 = vmatprep.subr.mxu0 0.0
        %1763 = vmatpush2.msra.mxu0 0.0
        %1764 = vmatprep.subr.mxu0 0.0
        %1765 = vmatpush2.msra.mxu0 0.0
        %1766 = vmatprep.subr.mxu0 0.0
        %1767 = vmatpush2.msra.mxu0 0.0
        %1768 = vmatprep.subr.mxu0 0.0
        %1769 = vmatpush2.msra.mxu0 0.0
        %1770 = vmatprep.mubr.f32.mxu0 0.0
        %v1771 = vand.u32 %v1679, 4294901760
        %v1772 = vsub.f32 %v1679, %v1771
        %v1773 = vand.u32 %v1772, 4294901760
        %v1774 = vsub.f32 %v1772, %v1773
        %v1775 = vand.u32 %v1774, 4294901760
        %1776 = vmatmul.mubr.f32.gmra.mxu0 %v1775
        %v1777 = vpop.f32.mrf.mxu0
        %v1778 = vadd.f32 %v1660, %v1777
        %v1779 = vpop.f32.mrf.mxu0
        %v1780 = vadd.f32 %v1660, %v1779
        %1781 = vmatprep.mubr.f32.mxu0 0.0
        %v1782 = vand.u32 %v1682, 4294901760
        %v1783 = vsub.f32 %v1682, %v1782
        %v1784 = vand.u32 %v1783, 4294901760
        %v1785 = vsub.f32 %v1783, %v1784
        %v1786 = vand.u32 %v1785, 4294901760
        %1787 = vmatmul.mubr.f32.gmra.mxu0 %v1786
        %v1788 = vpop.f32.mrf.mxu0
        %v1789 = vadd.f32 %v1665, %v1788
        %v1790 = vpop.f32.mrf.mxu0
        %v1791 = vadd.f32 %v1665, %v1790
        %1792 = vmatprep.mubr.f32.mxu0 0.0
        %v1793 = vand.u32 %v1685, 4294901760
        %v1794 = vsub.f32 %v1685, %v1793
        %v1795 = vand.u32 %v1794, 4294901760
        %v1796 = vsub.f32 %v1794, %v1795
        %v1797 = vand.u32 %v1796, 4294901760
        %1798 = vmatmul.mubr.f32.gmra.mxu0 %v1797
        %v1799 = vpop.f32.mrf.mxu0
        %v1800 = vadd.f32 %v1670, %v1799
        %v1801 = vpop.f32.mrf.mxu0
        %v1802 = vadd.f32 %v1670, %v1801
        %1803 = vmatprep.mubr.f32.mxu0 0.0
        %v1804 = vand.u32 %v1688, 4294901760
        %v1805 = vsub.f32 %v1688, %v1804
        %v1806 = vand.u32 %v1805, 4294901760
        %v1807 = vsub.f32 %v1805, %v1806
        %v1808 = vand.u32 %v1807, 4294901760
        %1809 = vmatmul.mubr.f32.gmra.mxu0 %v1808
        %v1810 = vpop.f32.mrf.mxu0
        %v1811 = vadd.f32 %v1675, %v1810
        %v1812 = vpop.f32.mrf.mxu0
        %v1813 = vadd.f32 %v1675, %v1812
        %1814 = vdwg.mxu0
        %1815 = vmatprep.subr.mxu0 0.0
        %1816 = vmatpush1.msra.mxu0 0.0
        %1817 = vmatprep.subr.mxu0 0.0
        %1818 = vmatpush1.msra.mxu0 0.0
        %1819 = vmatprep.subr.mxu0 0.0
        %1820 = vmatpush1.msra.mxu0 0.0
        %1821 = vmatprep.subr.mxu0 0.0
        %1822 = vmatpush1.msra.mxu0 0.0
        %1823 = vmatprep.subr.mxu0 0.0
        %1824 = vmatpush1.msra.mxu0 0.0
        %1825 = vmatprep.subr.mxu0 0.0
        %1826 = vmatpush1.msra.mxu0 0.0
        %1827 = vmatprep.subr.mxu0 0.0
        %1828 = vmatpush1.msra.mxu0 0.0
        %1829 = vmatprep.subr.mxu0 0.0
        %1830 = vmatpush1.msra.mxu0 0.0
        %v1831 = vand.u32 %v1648, 4294901760
        %v1832 = vsub.f32 %v1648, %v1831
        %v1833 = vand.u32 %v1832, 4294901760
        %v1834 = vsub.f32 %v1832, %v1833
        %v1835 = vand.u32 %v1834, 4294901760
        %1836 = vmatprep.subr.mxu0 %v1835
        %v1837 = vand.u32 %v1647, 4294901760
        %v1838 = vsub.f32 %v1647, %v1837
        %v1839 = vand.u32 %v1838, 4294901760
        %v1840 = vsub.f32 %v1838, %v1839
        %v1841 = vand.u32 %v1840, 4294901760
        %1842 = vmatpush1.msra.mxu0 %v1841
        %v1843 = vand.u32 %v1646, 4294901760
        %v1844 = vsub.f32 %v1646, %v1843
        %v1845 = vand.u32 %v1844, 4294901760
        %v1846 = vsub.f32 %v1844, %v1845
        %v1847 = vand.u32 %v1846, 4294901760
        %1848 = vmatprep.subr.mxu0 %v1847
        %v1849 = vand.u32 %v1645, 4294901760
        %v1850 = vsub.f32 %v1645, %v1849
        %v1851 = vand.u32 %v1850, 4294901760
        %v1852 = vsub.f32 %v1850, %v1851
        %v1853 = vand.u32 %v1852, 4294901760
        %1854 = vmatpush1.msra.mxu0 %v1853
        %v1855 = vand.u32 %v1644, 4294901760
        %v1856 = vsub.f32 %v1644, %v1855
        %v1857 = vand.u32 %v1856, 4294901760
        %v1858 = vsub.f32 %v1856, %v1857
        %v1859 = vand.u32 %v1858, 4294901760
        %1860 = vmatprep.subr.mxu0 %v1859
        %v1861 = vand.u32 %v1643, 4294901760
        %v1862 = vsub.f32 %v1643, %v1861
        %v1863 = vand.u32 %v1862, 4294901760
        %v1864 = vsub.f32 %v1862, %v1863
        %v1865 = vand.u32 %v1864, 4294901760
        %1866 = vmatpush1.msra.mxu0 %v1865
        %v1867 = vand.u32 %v1642, 4294901760
        %v1868 = vsub.f32 %v1642, %v1867
        %v1869 = vand.u32 %v1868, 4294901760
        %v1870 = vsub.f32 %v1868, %v1869
        %v1871 = vand.u32 %v1870, 4294901760
        %1872 = vmatprep.subr.mxu0 %v1871
        %v1873 = vand.u32 %v1641, 4294901760
        %v1874 = vsub.f32 %v1641, %v1873
        %v1875 = vand.u32 %v1874, 4294901760
        %v1876 = vsub.f32 %v1874, %v1875
        %v1877 = vand.u32 %v1876, 4294901760
        %1878 = vmatpush1.msra.mxu0 %v1877
        %v1879 = vand.u32 %v1640, 4294901760
        %v1880 = vsub.f32 %v1640, %v1879
        %v1881 = vand.u32 %v1880, 4294901760
        %v1882 = vsub.f32 %v1880, %v1881
        %v1883 = vand.u32 %v1882, 4294901760
        %1884 = vmatprep.subr.mxu0 %v1883
        %v1885 = vand.u32 %v1639, 4294901760
        %v1886 = vsub.f32 %v1639, %v1885
        %v1887 = vand.u32 %v1886, 4294901760
        %v1888 = vsub.f32 %v1886, %v1887
        %v1889 = vand.u32 %v1888, 4294901760
        %1890 = vmatpush1.msra.mxu0 %v1889
        %v1891 = vand.u32 %v1638, 4294901760
        %v1892 = vsub.f32 %v1638, %v1891
        %v1893 = vand.u32 %v1892, 4294901760
        %v1894 = vsub.f32 %v1892, %v1893
        %v1895 = vand.u32 %v1894, 4294901760
        %1896 = vmatprep.subr.mxu0 %v1895
        %v1897 = vand.u32 %v1637, 4294901760
        %v1898 = vsub.f32 %v1637, %v1897
        %v1899 = vand.u32 %v1898, 4294901760
        %v1900 = vsub.f32 %v1898, %v1899
        %v1901 = vand.u32 %v1900, 4294901760
        %1902 = vmatpush1.msra.mxu0 %v1901
        %v1903 = vand.u32 %v1636, 4294901760
        %v1904 = vsub.f32 %v1636, %v1903
        %v1905 = vand.u32 %v1904, 4294901760
        %v1906 = vsub.f32 %v1904, %v1905
        %v1907 = vand.u32 %v1906, 4294901760
        %1908 = vmatprep.subr.mxu0 %v1907
        %v1909 = vand.u32 %v1635, 4294901760
        %v1910 = vsub.f32 %v1635, %v1909
        %v1911 = vand.u32 %v1910, 4294901760
        %v1912 = vsub.f32 %v1910, %v1911
        %v1913 = vand.u32 %v1912, 4294901760
        %1914 = vmatpush1.msra.mxu0 %v1913
        %v1915 = vand.u32 %v1634, 4294901760
        %v1916 = vsub.f32 %v1634, %v1915
        %v1917 = vand.u32 %v1916, 4294901760
        %v1918 = vsub.f32 %v1916, %v1917
        %v1919 = vand.u32 %v1918, 4294901760
        %1920 = vmatprep.subr.mxu0 %v1919
        %v1921 = vand.u32 %v1633, 4294901760
        %v1922 = vsub.f32 %v1633, %v1921
        %v1923 = vand.u32 %v1922, 4294901760
        %v1924 = vsub.f32 %v1922, %v1923
        %v1925 = vand.u32 %v1924, 4294901760
        %1926 = vmatpush1.msra.mxu0 %v1925
        %1927 = vmatprep.subr.mxu0 0.0
        %1928 = vmatpush2.msra.mxu0 0.0
        %1929 = vmatprep.subr.mxu0 0.0
        %1930 = vmatpush2.msra.mxu0 0.0
        %1931 = vmatprep.subr.mxu0 0.0
        %1932 = vmatpush2.msra.mxu0 0.0
        %1933 = vmatprep.subr.mxu0 0.0
        %1934 = vmatpush2.msra.mxu0 0.0
        %1935 = vmatprep.subr.mxu0 0.0
        %1936 = vmatpush2.msra.mxu0 0.0
        %1937 = vmatprep.subr.mxu0 0.0
        %1938 = vmatpush2.msra.mxu0 0.0
        %1939 = vmatprep.subr.mxu0 0.0
        %1940 = vmatpush2.msra.mxu0 0.0
        %1941 = vmatprep.subr.mxu0 0.0
        %1942 = vmatpush2.msra.mxu0 0.0
        %1943 = vmatprep.subr.mxu0 0.0
        %1944 = vmatpush2.msra.mxu0 0.0
        %1945 = vmatprep.subr.mxu0 0.0
        %1946 = vmatpush2.msra.mxu0 0.0
        %1947 = vmatprep.subr.mxu0 0.0
        %1948 = vmatpush2.msra.mxu0 0.0
        %1949 = vmatprep.subr.mxu0 0.0
        %1950 = vmatpush2.msra.mxu0 0.0
        %1951 = vmatprep.subr.mxu0 0.0
        %1952 = vmatpush2.msra.mxu0 0.0
        %1953 = vmatprep.subr.mxu0 0.0
        %1954 = vmatpush2.msra.mxu0 0.0
        %1955 = vmatprep.subr.mxu0 0.0
        %1956 = vmatpush2.msra.mxu0 0.0
        %1957 = vmatprep.subr.mxu0 0.0
        %1958 = vmatpush2.msra.mxu0 0.0
        %1959 = vmatprep.mubr.f32.mxu0 0.0
        %v1960 = vand.u32 %v1679, 4294901760
        %1961 = vmatmul.mubr.f32.gmra.mxu0 %v1960
        %v1962 = vpop.f32.mrf.mxu0
        %v1963 = vadd.f32 %v1778, %v1962
        %v1964 = vpop.f32.mrf.mxu0
        %v1965 = vadd.f32 %v1780, %v1964
        %1966 = vmatprep.mubr.f32.mxu0 0.0
        %v1967 = vand.u32 %v1682, 4294901760
        %1968 = vmatmul.mubr.f32.gmra.mxu0 %v1967
        %v1969 = vpop.f32.mrf.mxu0
        %v1970 = vadd.f32 %v1789, %v1969
        %v1971 = vpop.f32.mrf.mxu0
        %v1972 = vadd.f32 %v1791, %v1971
        %1973 = vmatprep.mubr.f32.mxu0 0.0
        %v1974 = vand.u32 %v1685, 4294901760
        %1975 = vmatmul.mubr.f32.gmra.mxu0 %v1974
        %v1976 = vpop.f32.mrf.mxu0
        %v1977 = vadd.f32 %v1800, %v1976
        %v1978 = vpop.f32.mrf.mxu0
        %v1979 = vadd.f32 %v1802, %v1978
        %1980 = vmatprep.mubr.f32.mxu0 0.0
        %v1981 = vand.u32 %v1688, 4294901760
        %1982 = vmatmul.mubr.f32.gmra.mxu0 %v1981
        %v1983 = vpop.f32.mrf.mxu0
        %v1984 = vadd.f32 %v1811, %v1983
        %v1985 = vpop.f32.mrf.mxu0
        %v1986 = vadd.f32 %v1813, %v1985
        %1987 = vdwg.mxu0
        %1988 = vmatprep.subr.mxu0 0.0
        %1989 = vmatpush1.msra.mxu0 0.0
        %1990 = vmatprep.subr.mxu0 0.0
        %1991 = vmatpush1.msra.mxu0 0.0
        %1992 = vmatprep.subr.mxu0 0.0
        %1993 = vmatpush1.msra.mxu0 0.0
        %1994 = vmatprep.subr.mxu0 0.0
        %1995 = vmatpush1.msra.mxu0 0.0
        %1996 = vmatprep.subr.mxu0 0.0
        %1997 = vmatpush1.msra.mxu0 0.0
        %1998 = vmatprep.subr.mxu0 0.0
        %1999 = vmatpush1.msra.mxu0 0.0
        %2000 = vmatprep.subr.mxu0 0.0
        %2001 = vmatpush1.msra.mxu0 0.0
        %2002 = vmatprep.subr.mxu0 0.0
        %2003 = vmatpush1.msra.mxu0 0.0
        %v2004 = vand.u32 %v1648, 4294901760
        %v2005 = vsub.f32 %v1648, %v2004
        %2006 = vmatprep.subr.mxu0 %v2005
        %v2007 = vand.u32 %v1647, 4294901760
        %v2008 = vsub.f32 %v1647, %v2007
        %2009 = vmatpush1.msra.mxu0 %v2008
        %v2010 = vand.u32 %v1646, 4294901760
        %v2011 = vsub.f32 %v1646, %v2010
        %2012 = vmatprep.subr.mxu0 %v2011
        %v2013 = vand.u32 %v1645, 4294901760
        %v2014 = vsub.f32 %v1645, %v2013
        %2015 = vmatpush1.msra.mxu0 %v2014
        %v2016 = vand.u32 %v1644, 4294901760
        %v2017 = vsub.f32 %v1644, %v2016
        %2018 = vmatprep.subr.mxu0 %v2017
        %v2019 = vand.u32 %v1643, 4294901760
        %v2020 = vsub.f32 %v1643, %v2019
        %2021 = vmatpush1.msra.mxu0 %v2020
        %v2022 = vand.u32 %v1642, 4294901760
        %v2023 = vsub.f32 %v1642, %v2022
        %2024 = vmatprep.subr.mxu0 %v2023
        %v2025 = vand.u32 %v1641, 4294901760
        %v2026 = vsub.f32 %v1641, %v2025
        %2027 = vmatpush1.msra.mxu0 %v2026
        %v2028 = vand.u32 %v1640, 4294901760
        %v2029 = vsub.f32 %v1640, %v2028
        %2030 = vmatprep.subr.mxu0 %v2029
        %v2031 = vand.u32 %v1639, 4294901760
        %v2032 = vsub.f32 %v1639, %v2031
        %2033 = vmatpush1.msra.mxu0 %v2032
        %v2034 = vand.u32 %v1638, 4294901760
        %v2035 = vsub.f32 %v1638, %v2034
        %2036 = vmatprep.subr.mxu0 %v2035
        %v2037 = vand.u32 %v1637, 4294901760
        %v2038 = vsub.f32 %v1637, %v2037
        %2039 = vmatpush1.msra.mxu0 %v2038
        %v2040 = vand.u32 %v1636, 4294901760
        %v2041 = vsub.f32 %v1636, %v2040
        %2042 = vmatprep.subr.mxu0 %v2041
        %v2043 = vand.u32 %v1635, 4294901760
        %v2044 = vsub.f32 %v1635, %v2043
        %2045 = vmatpush1.msra.mxu0 %v2044
        %v2046 = vand.u32 %v1634, 4294901760
        %v2047 = vsub.f32 %v1634, %v2046
        %2048 = vmatprep.subr.mxu0 %v2047
        %v2049 = vand.u32 %v1633, 4294901760
        %v2050 = vsub.f32 %v1633, %v2049
        %2051 = vmatpush1.msra.mxu0 %v2050
        %2052 = vmatprep.subr.mxu0 0.0
        %2053 = vmatpush2.msra.mxu0 0.0
        %2054 = vmatprep.subr.mxu0 0.0
        %2055 = vmatpush2.msra.mxu0 0.0
        %2056 = vmatprep.subr.mxu0 0.0
        %2057 = vmatpush2.msra.mxu0 0.0
        %2058 = vmatprep.subr.mxu0 0.0
        %2059 = vmatpush2.msra.mxu0 0.0
        %2060 = vmatprep.subr.mxu0 0.0
        %2061 = vmatpush2.msra.mxu0 0.0
        %2062 = vmatprep.subr.mxu0 0.0
        %2063 = vmatpush2.msra.mxu0 0.0
        %2064 = vmatprep.subr.mxu0 0.0
        %2065 = vmatpush2.msra.mxu0 0.0
        %2066 = vmatprep.subr.mxu0 0.0
        %2067 = vmatpush2.msra.mxu0 0.0
        %2068 = vmatprep.subr.mxu0 0.0
        %2069 = vmatpush2.msra.mxu0 0.0
        %2070 = vmatprep.subr.mxu0 0.0
        %2071 = vmatpush2.msra.mxu0 0.0
        %2072 = vmatprep.subr.mxu0 0.0
        %2073 = vmatpush2.msra.mxu0 0.0
        %2074 = vmatprep.subr.mxu0 0.0
        %2075 = vmatpush2.msra.mxu0 0.0
        %2076 = vmatprep.subr.mxu0 0.0
        %2077 = vmatpush2.msra.mxu0 0.0
        %2078 = vmatprep.subr.mxu0 0.0
        %2079 = vmatpush2.msra.mxu0 0.0
        %2080 = vmatprep.subr.mxu0 0.0
        %2081 = vmatpush2.msra.mxu0 0.0
        %2082 = vmatprep.subr.mxu0 0.0
        %2083 = vmatpush2.msra.mxu0 0.0
        %2084 = vmatprep.mubr.f32.mxu0 0.0
        %v2085 = vand.u32 %v1679, 4294901760
        %v2086 = vsub.f32 %v1679, %v2085
        %2087 = vmatmul.mubr.f32.gmra.mxu0 %v2086
        %v2088 = vpop.f32.mrf.mxu0
        %v2089 = vadd.f32 %v1963, %v2088
        %v2090 = vpop.f32.mrf.mxu0
        %v2091 = vadd.f32 %v1965, %v2090
        %2092 = vmatprep.mubr.f32.mxu0 0.0
        %v2093 = vand.u32 %v1682, 4294901760
        %v2094 = vsub.f32 %v1682, %v2093
        %2095 = vmatmul.mubr.f32.gmra.mxu0 %v2094
        %v2096 = vpop.f32.mrf.mxu0
        %v2097 = vadd.f32 %v1970, %v2096
        %v2098 = vpop.f32.mrf.mxu0
        %v2099 = vadd.f32 %v1972, %v2098
        %2100 = vmatprep.mubr.f32.mxu0 0.0
        %v2101 = vand.u32 %v1685, 4294901760
        %v2102 = vsub.f32 %v1685, %v2101
        %2103 = vmatmul.mubr.f32.gmra.mxu0 %v2102
        %v2104 = vpop.f32.mrf.mxu0
        %v2105 = vadd.f32 %v1977, %v2104
        %v2106 = vpop.f32.mrf.mxu0
        %v2107 = vadd.f32 %v1979, %v2106
        %2108 = vmatprep.mubr.f32.mxu0 0.0
        %v2109 = vand.u32 %v1688, 4294901760
        %v2110 = vsub.f32 %v1688, %v2109
        %2111 = vmatmul.mubr.f32.gmra.mxu0 %v2110
        %v2112 = vpop.f32.mrf.mxu0
        %v2113 = vadd.f32 %v1984, %v2112
        %v2114 = vpop.f32.mrf.mxu0
        %v2115 = vadd.f32 %v1986, %v2114
        %2116 = vdwg.mxu0
        %2117 = vmatprep.subr.mxu0 0.0
        %2118 = vmatpush1.msra.mxu0 0.0
        %2119 = vmatprep.subr.mxu0 0.0
        %2120 = vmatpush1.msra.mxu0 0.0
        %2121 = vmatprep.subr.mxu0 0.0
        %2122 = vmatpush1.msra.mxu0 0.0
        %2123 = vmatprep.subr.mxu0 0.0
        %2124 = vmatpush1.msra.mxu0 0.0
        %2125 = vmatprep.subr.mxu0 0.0
        %2126 = vmatpush1.msra.mxu0 0.0
        %2127 = vmatprep.subr.mxu0 0.0
        %2128 = vmatpush1.msra.mxu0 0.0
        %2129 = vmatprep.subr.mxu0 0.0
        %2130 = vmatpush1.msra.mxu0 0.0
        %2131 = vmatprep.subr.mxu0 0.0
        %2132 = vmatpush1.msra.mxu0 0.0
        %v2133 = vand.u32 %v1648, 4294901760
        %2134 = vmatprep.subr.mxu0 %v2133
        %v2135 = vand.u32 %v1647, 4294901760
        %2136 = vmatpush1.msra.mxu0 %v2135
        %v2137 = vand.u32 %v1646, 4294901760
        %2138 = vmatprep.subr.mxu0 %v2137
        %v2139 = vand.u32 %v1645, 4294901760
        %2140 = vmatpush1.msra.mxu0 %v2139
        %v2141 = vand.u32 %v1644, 4294901760
        %2142 = vmatprep.subr.mxu0 %v2141
        %v2143 = vand.u32 %v1643, 4294901760
        %2144 = vmatpush1.msra.mxu0 %v2143
        %v2145 = vand.u32 %v1642, 4294901760
        %2146 = vmatprep.subr.mxu0 %v2145
        %v2147 = vand.u32 %v1641, 4294901760
        %2148 = vmatpush1.msra.mxu0 %v2147
        %v2149 = vand.u32 %v1640, 4294901760
        %2150 = vmatprep.subr.mxu0 %v2149
        %v2151 = vand.u32 %v1639, 4294901760
        %2152 = vmatpush1.msra.mxu0 %v2151
        %v2153 = vand.u32 %v1638, 4294901760
        %2154 = vmatprep.subr.mxu0 %v2153
        %v2155 = vand.u32 %v1637, 4294901760
        %2156 = vmatpush1.msra.mxu0 %v2155
        %v2157 = vand.u32 %v1636, 4294901760
        %2158 = vmatprep.subr.mxu0 %v2157
        %v2159 = vand.u32 %v1635, 4294901760
        %2160 = vmatpush1.msra.mxu0 %v2159
        %v2161 = vand.u32 %v1634, 4294901760
        %2162 = vmatprep.subr.mxu0 %v2161
        %v2163 = vand.u32 %v1633, 4294901760
        %2164 = vmatpush1.msra.mxu0 %v2163
        %2165 = vmatprep.subr.mxu0 0.0
        %2166 = vmatpush2.msra.mxu0 0.0
        %2167 = vmatprep.subr.mxu0 0.0
        %2168 = vmatpush2.msra.mxu0 0.0
        %2169 = vmatprep.subr.mxu0 0.0
        %2170 = vmatpush2.msra.mxu0 0.0
        %2171 = vmatprep.subr.mxu0 0.0
        %2172 = vmatpush2.msra.mxu0 0.0
        %2173 = vmatprep.subr.mxu0 0.0
        %2174 = vmatpush2.msra.mxu0 0.0
        %2175 = vmatprep.subr.mxu0 0.0
        %2176 = vmatpush2.msra.mxu0 0.0
        %2177 = vmatprep.subr.mxu0 0.0
        %2178 = vmatpush2.msra.mxu0 0.0
        %2179 = vmatprep.subr.mxu0 0.0
        %2180 = vmatpush2.msra.mxu0 0.0
        %2181 = vmatprep.subr.mxu0 0.0
        %2182 = vmatpush2.msra.mxu0 0.0
        %2183 = vmatprep.subr.mxu0 0.0
        %2184 = vmatpush2.msra.mxu0 0.0
        %2185 = vmatprep.subr.mxu0 0.0
        %2186 = vmatpush2.msra.mxu0 0.0
        %2187 = vmatprep.subr.mxu0 0.0
        %2188 = vmatpush2.msra.mxu0 0.0
        %2189 = vmatprep.subr.mxu0 0.0
        %2190 = vmatpush2.msra.mxu0 0.0
        %2191 = vmatprep.subr.mxu0 0.0
        %2192 = vmatpush2.msra.mxu0 0.0
        %2193 = vmatprep.subr.mxu0 0.0
        %2194 = vmatpush2.msra.mxu0 0.0
        %2195 = vmatprep.subr.mxu0 0.0
        %2196 = vmatpush2.msra.mxu0 0.0
        %2197 = vmatprep.mubr.f32.mxu0 0.0
        %v2198 = vand.u32 %v1679, 4294901760
        %v2199 = vsub.f32 %v1679, %v2198
        %v2200 = vand.u32 %v2199, 4294901760
        %2201 = vmatmul.mubr.f32.gmra.mxu0 %v2200
        %v2202 = vpop.f32.mrf.mxu0
        %v2203 = vadd.f32 %v2089, %v2202
        %v2204 = vpop.f32.mrf.mxu0
        %v2205 = vadd.f32 %v2091, %v2204
        %2206 = vmatprep.mubr.f32.mxu0 0.0
        %v2207 = vand.u32 %v1682, 4294901760
        %v2208 = vsub.f32 %v1682, %v2207
        %v2209 = vand.u32 %v2208, 4294901760
        %2210 = vmatmul.mubr.f32.gmra.mxu0 %v2209
        %v2211 = vpop.f32.mrf.mxu0
        %v2212 = vadd.f32 %v2097, %v2211
        %v2213 = vpop.f32.mrf.mxu0
        %v2214 = vadd.f32 %v2099, %v2213
        %2215 = vmatprep.mubr.f32.mxu0 0.0
        %v2216 = vand.u32 %v1685, 4294901760
        %v2217 = vsub.f32 %v1685, %v2216
        %v2218 = vand.u32 %v2217, 4294901760
        %2219 = vmatmul.mubr.f32.gmra.mxu0 %v2218
        %v2220 = vpop.f32.mrf.mxu0
        %v2221 = vadd.f32 %v2105, %v2220
        %v2222 = vpop.f32.mrf.mxu0
        %v2223 = vadd.f32 %v2107, %v2222
        %2224 = vmatprep.mubr.f32.mxu0 0.0
        %v2225 = vand.u32 %v1688, 4294901760
        %v2226 = vsub.f32 %v1688, %v2225
        %v2227 = vand.u32 %v2226, 4294901760
        %2228 = vmatmul.mubr.f32.gmra.mxu0 %v2227
        %v2229 = vpop.f32.mrf.mxu0
        %v2230 = vadd.f32 %v2113, %v2229
        %v2231 = vpop.f32.mrf.mxu0
        %v2232 = vadd.f32 %v2115, %v2231
        %2233 = vdwg.mxu0
        %2234 = vmatprep.subr.mxu0 0.0
        %2235 = vmatpush1.msra.mxu0 0.0
        %2236 = vmatprep.subr.mxu0 0.0
        %2237 = vmatpush1.msra.mxu0 0.0
        %2238 = vmatprep.subr.mxu0 0.0
        %2239 = vmatpush1.msra.mxu0 0.0
        %2240 = vmatprep.subr.mxu0 0.0
        %2241 = vmatpush1.msra.mxu0 0.0
        %2242 = vmatprep.subr.mxu0 0.0
        %2243 = vmatpush1.msra.mxu0 0.0
        %2244 = vmatprep.subr.mxu0 0.0
        %2245 = vmatpush1.msra.mxu0 0.0
        %2246 = vmatprep.subr.mxu0 0.0
        %2247 = vmatpush1.msra.mxu0 0.0
        %2248 = vmatprep.subr.mxu0 0.0
        %2249 = vmatpush1.msra.mxu0 0.0
        %v2250 = vand.u32 %v1648, 4294901760
        %v2251 = vsub.f32 %v1648, %v2250
        %v2252 = vand.u32 %v2251, 4294901760
        %2253 = vmatprep.subr.mxu0 %v2252
        %v2254 = vand.u32 %v1647, 4294901760
        %v2255 = vsub.f32 %v1647, %v2254
        %v2256 = vand.u32 %v2255, 4294901760
        %2257 = vmatpush1.msra.mxu0 %v2256
        %v2258 = vand.u32 %v1646, 4294901760
        %v2259 = vsub.f32 %v1646, %v2258
        %v2260 = vand.u32 %v2259, 4294901760
        %2261 = vmatprep.subr.mxu0 %v2260
        %v2262 = vand.u32 %v1645, 4294901760
        %v2263 = vsub.f32 %v1645, %v2262
        %v2264 = vand.u32 %v2263, 4294901760
        %2265 = vmatpush1.msra.mxu0 %v2264
        %v2266 = vand.u32 %v1644, 4294901760
        %v2267 = vsub.f32 %v1644, %v2266
        %v2268 = vand.u32 %v2267, 4294901760
        %2269 = vmatprep.subr.mxu0 %v2268
        %v2270 = vand.u32 %v1643, 4294901760
        %v2271 = vsub.f32 %v1643, %v2270
        %v2272 = vand.u32 %v2271, 4294901760
        %2273 = vmatpush1.msra.mxu0 %v2272
        %v2274 = vand.u32 %v1642, 4294901760
        %v2275 = vsub.f32 %v1642, %v2274
        %v2276 = vand.u32 %v2275, 4294901760
        %2277 = vmatprep.subr.mxu0 %v2276
        %v2278 = vand.u32 %v1641, 4294901760
        %v2279 = vsub.f32 %v1641, %v2278
        %v2280 = vand.u32 %v2279, 4294901760
        %2281 = vmatpush1.msra.mxu0 %v2280
        %v2282 = vand.u32 %v1640, 4294901760
        %v2283 = vsub.f32 %v1640, %v2282
        %v2284 = vand.u32 %v2283, 4294901760
        %2285 = vmatprep.subr.mxu0 %v2284
        %v2286 = vand.u32 %v1639, 4294901760
        %v2287 = vsub.f32 %v1639, %v2286
        %v2288 = vand.u32 %v2287, 4294901760
        %2289 = vmatpush1.msra.mxu0 %v2288
        %v2290 = vand.u32 %v1638, 4294901760
        %v2291 = vsub.f32 %v1638, %v2290
        %v2292 = vand.u32 %v2291, 4294901760
        %2293 = vmatprep.subr.mxu0 %v2292
        %v2294 = vand.u32 %v1637, 4294901760
        %v2295 = vsub.f32 %v1637, %v2294
        %v2296 = vand.u32 %v2295, 4294901760
        %2297 = vmatpush1.msra.mxu0 %v2296
        %v2298 = vand.u32 %v1636, 4294901760
        %v2299 = vsub.f32 %v1636, %v2298
        %v2300 = vand.u32 %v2299, 4294901760
        %2301 = vmatprep.subr.mxu0 %v2300
        %v2302 = vand.u32 %v1635, 4294901760
        %v2303 = vsub.f32 %v1635, %v2302
        %v2304 = vand.u32 %v2303, 4294901760
        %2305 = vmatpush1.msra.mxu0 %v2304
        %v2306 = vand.u32 %v1634, 4294901760
        %v2307 = vsub.f32 %v1634, %v2306
        %v2308 = vand.u32 %v2307, 4294901760
        %2309 = vmatprep.subr.mxu0 %v2308
        %v2310 = vand.u32 %v1633, 4294901760
        %v2311 = vsub.f32 %v1633, %v2310
        %v2312 = vand.u32 %v2311, 4294901760
        %2313 = vmatpush1.msra.mxu0 %v2312
        %2314 = vmatprep.subr.mxu0 0.0
        %2315 = vmatpush2.msra.mxu0 0.0
        %2316 = vmatprep.subr.mxu0 0.0
        %2317 = vmatpush2.msra.mxu0 0.0
        %2318 = vmatprep.subr.mxu0 0.0
        %2319 = vmatpush2.msra.mxu0 0.0
        %2320 = vmatprep.subr.mxu0 0.0
        %2321 = vmatpush2.msra.mxu0 0.0
        %2322 = vmatprep.subr.mxu0 0.0
        %2323 = vmatpush2.msra.mxu0 0.0
        %2324 = vmatprep.subr.mxu0 0.0
        %2325 = vmatpush2.msra.mxu0 0.0
        %2326 = vmatprep.subr.mxu0 0.0
        %2327 = vmatpush2.msra.mxu0 0.0
        %2328 = vmatprep.subr.mxu0 0.0
        %2329 = vmatpush2.msra.mxu0 0.0
        %2330 = vmatprep.subr.mxu0 0.0
        %2331 = vmatpush2.msra.mxu0 0.0
        %2332 = vmatprep.subr.mxu0 0.0
        %2333 = vmatpush2.msra.mxu0 0.0
        %2334 = vmatprep.subr.mxu0 0.0
        %2335 = vmatpush2.msra.mxu0 0.0
        %2336 = vmatprep.subr.mxu0 0.0
        %2337 = vmatpush2.msra.mxu0 0.0
        %2338 = vmatprep.subr.mxu0 0.0
        %2339 = vmatpush2.msra.mxu0 0.0
        %2340 = vmatprep.subr.mxu0 0.0
        %2341 = vmatpush2.msra.mxu0 0.0
        %2342 = vmatprep.subr.mxu0 0.0
        %2343 = vmatpush2.msra.mxu0 0.0
        %2344 = vmatprep.subr.mxu0 0.0
        %2345 = vmatpush2.msra.mxu0 0.0
        %2346 = vmatprep.mubr.f32.mxu0 0.0
        %v2347 = vand.u32 %v1679, 4294901760
        %2348 = vmatmul.mubr.f32.gmra.mxu0 %v2347
        %v2349 = vpop.f32.mrf.mxu0
        %v2350 = vadd.f32 %v2203, %v2349
        %v2351 = vpop.f32.mrf.mxu0
        %v2352 = vadd.f32 %v2205, %v2351
        %2353 = vmatprep.mubr.f32.mxu0 0.0
        %v2354 = vand.u32 %v1682, 4294901760
        %2355 = vmatmul.mubr.f32.gmra.mxu0 %v2354
        %v2356 = vpop.f32.mrf.mxu0
        %v2357 = vadd.f32 %v2212, %v2356
        %v2358 = vpop.f32.mrf.mxu0
        %v2359 = vadd.f32 %v2214, %v2358
        %2360 = vmatprep.mubr.f32.mxu0 0.0
        %v2361 = vand.u32 %v1685, 4294901760
        %2362 = vmatmul.mubr.f32.gmra.mxu0 %v2361
        %v2363 = vpop.f32.mrf.mxu0
        %v2364 = vadd.f32 %v2221, %v2363
        %v2365 = vpop.f32.mrf.mxu0
        %v2366 = vadd.f32 %v2223, %v2365
        %2367 = vmatprep.mubr.f32.mxu0 0.0
        %v2368 = vand.u32 %v1688, 4294901760
        %2369 = vmatmul.mubr.f32.gmra.mxu0 %v2368
        %v2370 = vpop.f32.mrf.mxu0
        %v2371 = vadd.f32 %v2230, %v2370
        %v2372 = vpop.f32.mrf.mxu0
        %v2373 = vadd.f32 %v2232, %v2372
        %2374 = vdwg.mxu0
        %2375 = vmatprep.subr.mxu0 0.0
        %2376 = vmatpush1.msra.mxu0 0.0
        %2377 = vmatprep.subr.mxu0 0.0
        %2378 = vmatpush1.msra.mxu0 0.0
        %2379 = vmatprep.subr.mxu0 0.0
        %2380 = vmatpush1.msra.mxu0 0.0
        %2381 = vmatprep.subr.mxu0 0.0
        %2382 = vmatpush1.msra.mxu0 0.0
        %2383 = vmatprep.subr.mxu0 0.0
        %2384 = vmatpush1.msra.mxu0 0.0
        %2385 = vmatprep.subr.mxu0 0.0
        %2386 = vmatpush1.msra.mxu0 0.0
        %2387 = vmatprep.subr.mxu0 0.0
        %2388 = vmatpush1.msra.mxu0 0.0
        %2389 = vmatprep.subr.mxu0 0.0
        %2390 = vmatpush1.msra.mxu0 0.0
        %v2391 = vand.u32 %v1648, 4294901760
        %2392 = vmatprep.subr.mxu0 %v2391
        %v2393 = vand.u32 %v1647, 4294901760
        %2394 = vmatpush1.msra.mxu0 %v2393
        %v2395 = vand.u32 %v1646, 4294901760
        %2396 = vmatprep.subr.mxu0 %v2395
        %v2397 = vand.u32 %v1645, 4294901760
        %2398 = vmatpush1.msra.mxu0 %v2397
        %v2399 = vand.u32 %v1644, 4294901760
        %2400 = vmatprep.subr.mxu0 %v2399
        %v2401 = vand.u32 %v1643, 4294901760
        %2402 = vmatpush1.msra.mxu0 %v2401
        %v2403 = vand.u32 %v1642, 4294901760
        %2404 = vmatprep.subr.mxu0 %v2403
        %v2405 = vand.u32 %v1641, 4294901760
        %2406 = vmatpush1.msra.mxu0 %v2405
        %v2407 = vand.u32 %v1640, 4294901760
        %2408 = vmatprep.subr.mxu0 %v2407
        %v2409 = vand.u32 %v1639, 4294901760
        %2410 = vmatpush1.msra.mxu0 %v2409
        %v2411 = vand.u32 %v1638, 4294901760
        %2412 = vmatprep.subr.mxu0 %v2411
        %v2413 = vand.u32 %v1637, 4294901760
        %2414 = vmatpush1.msra.mxu0 %v2413
        %v2415 = vand.u32 %v1636, 4294901760
        %2416 = vmatprep.subr.mxu0 %v2415
        %v2417 = vand.u32 %v1635, 4294901760
        %2418 = vmatpush1.msra.mxu0 %v2417
        %v2419 = vand.u32 %v1634, 4294901760
        %2420 = vmatprep.subr.mxu0 %v2419
        %v2421 = vand.u32 %v1633, 4294901760
        %2422 = vmatpush1.msra.mxu0 %v2421
        %2423 = vmatprep.subr.mxu0 0.0
        %2424 = vmatpush2.msra.mxu0 0.0
        %2425 = vmatprep.subr.mxu0 0.0
        %2426 = vmatpush2.msra.mxu0 0.0
        %2427 = vmatprep.subr.mxu0 0.0
        %2428 = vmatpush2.msra.mxu0 0.0
        %2429 = vmatprep.subr.mxu0 0.0
        %2430 = vmatpush2.msra.mxu0 0.0
        %2431 = vmatprep.subr.mxu0 0.0
        %2432 = vmatpush2.msra.mxu0 0.0
        %2433 = vmatprep.subr.mxu0 0.0
        %2434 = vmatpush2.msra.mxu0 0.0
        %2435 = vmatprep.subr.mxu0 0.0
        %2436 = vmatpush2.msra.mxu0 0.0
        %2437 = vmatprep.subr.mxu0 0.0
        %2438 = vmatpush2.msra.mxu0 0.0
        %2439 = vmatprep.subr.mxu0 0.0
        %2440 = vmatpush2.msra.mxu0 0.0
        %2441 = vmatprep.subr.mxu0 0.0
        %2442 = vmatpush2.msra.mxu0 0.0
        %2443 = vmatprep.subr.mxu0 0.0
        %2444 = vmatpush2.msra.mxu0 0.0
        %2445 = vmatprep.subr.mxu0 0.0
        %2446 = vmatpush2.msra.mxu0 0.0
        %2447 = vmatprep.subr.mxu0 0.0
        %2448 = vmatpush2.msra.mxu0 0.0
        %2449 = vmatprep.subr.mxu0 0.0
        %2450 = vmatpush2.msra.mxu0 0.0
        %2451 = vmatprep.subr.mxu0 0.0
        %2452 = vmatpush2.msra.mxu0 0.0
        %2453 = vmatprep.subr.mxu0 0.0
        %2454 = vmatpush2.msra.mxu0 0.0
        %2455 = vmatprep.mubr.f32.mxu0 0.0
        %v2456 = vand.u32 %v1679, 4294901760
        %2457 = vmatmul.mubr.f32.gmra.mxu0 %v2456
        %v2458 = vpop.f32.mrf.mxu0
        %v2459 = vadd.f32 %v2350, %v2458
        %v2460 = vpop.f32.mrf.mxu0
        %v2461 = vadd.f32 %v2352, %v2460
        %2462 = vmatprep.mubr.f32.mxu0 0.0
        %v2463 = vand.u32 %v1682, 4294901760
        %2464 = vmatmul.mubr.f32.gmra.mxu0 %v2463
        %v2465 = vpop.f32.mrf.mxu0
        %v2466 = vadd.f32 %v2357, %v2465
        %v2467 = vpop.f32.mrf.mxu0
        %v2468 = vadd.f32 %v2359, %v2467
        %2469 = vmatprep.mubr.f32.mxu0 0.0
        %v2470 = vand.u32 %v1685, 4294901760
        %2471 = vmatmul.mubr.f32.gmra.mxu0 %v2470
        %v2472 = vpop.f32.mrf.mxu0
        %v2473 = vadd.f32 %v2364, %v2472
        %v2474 = vpop.f32.mrf.mxu0
        %v2475 = vadd.f32 %v2366, %v2474
        %2476 = vmatprep.mubr.f32.mxu0 0.0
        %v2477 = vand.u32 %v1688, 4294901760
        %2478 = vmatmul.mubr.f32.gmra.mxu0 %v2477
        %v2479 = vpop.f32.mrf.mxu0
        %v2480 = vadd.f32 %v2371, %v2479
        %v2481 = vpop.f32.mrf.mxu0
        %v2482 = vadd.f32 %v2373, %v2481
        %2483 = vdwg.mxu0
        %v2484 = vmax.f32 %v2459, 0.0
        %v2485 = vmax.f32 %v2461, 0.0
        %v2486 = vmax.f32 %v2466, 0.0
        %v2487 = vmax.f32 %v2468, 0.0
        %v2488 = vmax.f32 %v2473, 0.0
        %v2489 = vmax.f32 %v2475, 0.0
        %v2490 = vmax.f32 %v2480, 0.0
        %v2491 = vmax.f32 %v2482, 0.0
        %v2492 = vand.u32 2147483647, %v2459
        %v2493 = vand.u32 2147483647, %v2461
        %v2494 = vand.u32 2147483647, %v2466
        %v2495 = vand.u32 2147483647, %v2468
        %v2496 = vand.u32 2147483647, %v2473
        %v2497 = vand.u32 2147483647, %v2475
        %v2498 = vand.u32 2147483647, %v2480
        %v2499 = vand.u32 2147483647, %v2482
        %v2500 = vsub.f32 0.0, %v2492
        %v2501 = vsub.f32 0.0, %v2493
        %v2502 = vsub.f32 0.0, %v2494
        %v2503 = vsub.f32 0.0, %v2495
        %v2504 = vsub.f32 0.0, %v2496
        %v2505 = vsub.f32 0.0, %v2497
        %v2506 = vsub.f32 0.0, %v2498
        %v2507 = vsub.f32 0.0, %v2499
        %v2508 = vmul.f32 %v2500, 1.442695
        %v2509 = vpow.pop %v2508
        %v2510 = vmul.f32 %v2501, 1.442695
        %v2511 = vpow.pop %v2510
        %v2512 = vmul.f32 %v2502, 1.442695
        %v2513 = vpow.pop %v2512
        %v2514 = vmul.f32 %v2503, 1.442695
        %v2515 = vpow.pop %v2514
        %v2516 = vmul.f32 %v2504, 1.442695
        %v2517 = vpow.pop %v2516
        %v2518 = vmul.f32 %v2505, 1.442695
        %v2519 = vpow.pop %v2518
        %v2520 = vmul.f32 %v2506, 1.442695
        %v2521 = vpow.pop %v2520
        %v2522 = vmul.f32 %v2507, 1.442695
        %v2523 = vpow.pop %v2522
        %v2524 = vadd.f32 %v2509, 1.0
        %v2525 = vlog2.pop %v2524
        %v2526 = vmul.f32 %v2525, 0.6931472
        %v2527 = vmul.f32 -0.5, %v2509
        %v2528 = vadd.f32 %v2527, 1.0
        %v2529 = vmul.f32 %v2528, %v2509
        %v2530 = vand.u32 2147483647, %v2509
        %vm2531 = vcmp.lt.f32.partialorder %v2530, 0.0004427343
        %v2532 = vsel %vm2531, %v2529, %v2526
        %v2533 = vadd.f32 %v2511, 1.0
        %v2534 = vlog2.pop %v2533
        %v2535 = vmul.f32 %v2534, 0.6931472
        %v2536 = vmul.f32 -0.5, %v2511
        %v2537 = vadd.f32 %v2536, 1.0
        %v2538 = vmul.f32 %v2537, %v2511
        %v2539 = vand.u32 2147483647, %v2511
        %vm2540 = vcmp.lt.f32.partialorder %v2539, 0.0004427343
        %v2541 = vsel %vm2540, %v2538, %v2535
        %v2542 = vadd.f32 %v2513, 1.0
        %v2543 = vlog2.pop %v2542
        %v2544 = vmul.f32 %v2543, 0.6931472
        %v2545 = vmul.f32 -0.5, %v2513
        %v2546 = vadd.f32 %v2545, 1.0
        %v2547 = vmul.f32 %v2546, %v2513
        %v2548 = vand.u32 2147483647, %v2513
        %vm2549 = vcmp.lt.f32.partialorder %v2548, 0.0004427343
        %v2550 = vsel %vm2549, %v2547, %v2544
        %v2551 = vadd.f32 %v2515, 1.0
        %v2552 = vlog2.pop %v2551
        %v2553 = vmul.f32 %v2552, 0.6931472
        %v2554 = vmul.f32 -0.5, %v2515
        %v2555 = vadd.f32 %v2554, 1.0
        %v2556 = vmul.f32 %v2555, %v2515
        %v2557 = vand.u32 2147483647, %v2515
        %vm2558 = vcmp.lt.f32.partialorder %v2557, 0.0004427343
        %v2559 = vsel %vm2558, %v2556, %v2553
        %v2560 = vadd.f32 %v2517, 1.0
        %v2561 = vlog2.pop %v2560
        %v2562 = vmul.f32 %v2561, 0.6931472
        %v2563 = vmul.f32 -0.5, %v2517
        %v2564 = vadd.f32 %v2563, 1.0
        %v2565 = vmul.f32 %v2564, %v2517
        %v2566 = vand.u32 2147483647, %v2517
        %vm2567 = vcmp.lt.f32.partialorder %v2566, 0.0004427343
        %v2568 = vsel %vm2567, %v2565, %v2562
        %v2569 = vadd.f32 %v2519, 1.0
        %v2570 = vlog2.pop %v2569
        %v2571 = vmul.f32 %v2570, 0.6931472
        %v2572 = vmul.f32 -0.5, %v2519
        %v2573 = vadd.f32 %v2572, 1.0
        %v2574 = vmul.f32 %v2573, %v2519
        %v2575 = vand.u32 2147483647, %v2519
        %vm2576 = vcmp.lt.f32.partialorder %v2575, 0.0004427343
        %v2577 = vsel %vm2576, %v2574, %v2571
        %v2578 = vadd.f32 %v2521, 1.0
        %v2579 = vlog2.pop %v2578
        %v2580 = vmul.f32 %v2579, 0.6931472
        %v2581 = vmul.f32 -0.5, %v2521
        %v2582 = vadd.f32 %v2581, 1.0
        %v2583 = vmul.f32 %v2582, %v2521
        %v2584 = vand.u32 2147483647, %v2521
        %vm2585 = vcmp.lt.f32.partialorder %v2584, 0.0004427343
        %v2586 = vsel %vm2585, %v2583, %v2580
        %v2587 = vadd.f32 %v2523, 1.0
        %v2588 = vlog2.pop %v2587
        %v2589 = vmul.f32 %v2588, 0.6931472
        %v2590 = vmul.f32 -0.5, %v2523
        %v2591 = vadd.f32 %v2590, 1.0
        %v2592 = vmul.f32 %v2591, %v2523
        %v2593 = vand.u32 2147483647, %v2523
        %vm2594 = vcmp.lt.f32.partialorder %v2593, 0.0004427343
        %v2595 = vsel %vm2594, %v2592, %v2589
        %v2596 = vadd.f32 %v2484, %v2532
        %v2597 = vadd.f32 %v2485, %v2541
        %v2598 = vadd.f32 %v2486, %v2550
        %v2599 = vadd.f32 %v2487, %v2559
        %v2600 = vadd.f32 %v2488, %v2568
        %v2601 = vadd.f32 %v2489, %v2577
        %v2602 = vadd.f32 %v2490, %v2586
        %v2603 = vadd.f32 %v2491, %v2595
        %v2604 = vlaneseq
        %v2605 = vshrl.u32 %v2604, 7
        %v2606 = vadd.s32 %v2605, 8
        %v2607 = vadd.s32 %v2605, 16
        %v2608 = vadd.s32 %v2605, 24
        %vm2609 = vcmp.ge.s32.totalorder %v2605, 16
        %vm2610 = vcmp.ge.s32.totalorder %v2606, 16
        %vm2611 = vcmp.ge.s32.totalorder %v2607, 16
        %vm2612 = vcmp.ge.s32.totalorder %v2608, 16
        %v2613 = vsel %vm2609, %v2596, %v2459
        %v2614 = vsel %vm2609, %v2597, %v2461
        %v2615 = vsel %vm2610, %v2598, %v2466
        %v2616 = vsel %vm2610, %v2599, %v2468
        %v2617 = vsel %vm2611, %v2600, %v2473
        %v2618 = vsel %vm2611, %v2601, %v2475
        %v2619 = vsel %vm2612, %v2602, %v2480
        %v2620 = vsel %vm2612, %v2603, %v2482
        %2621 = vst [vmem:[%s218] sm:$0xff] %v2613
        %2622 = vst [vmem:[%s218 + $0x8] sm:$0xff] %v2614
        %2623 = vst [vmem:[%s218 + $0x10] sm:$0xff] %v2615
        %2624 = vst [vmem:[%s218 + $0x18] sm:$0xff] %v2616
        %2625 = vst [vmem:[%s218 + $0x20] sm:$0xff] %v2617
        %2626 = vst [vmem:[%s218 + $0x28] sm:$0xff] %v2618
        %2627 = vst [vmem:[%s218 + $0x30] sm:$0xff] %v2619
        %2628 = vst [vmem:[%s218 + $0x38] sm:$0xff] %v2620
        %s2629 = sand.u32 %s137, 1
        %s2630 = scalar_lea.sflag [#allocation3], %s2629
        %s2631 = sand.u32 %s137, 1
        %s2632 = smul.addr %s2631, 64
        %s2633 = scalar_lea.vmem [#allocation2], %s2632
        // Predicated region
        $region41: #{tpu_custom_call.1} parent=39 // pred_check
          %p2634 = pneg %p147
        $region42: #{tpu_custom_call.1} parent=39 // pred_check_branch
          %2636 = sbr.rel (%p2634) target = $region44
        $region43: #{tpu_custom_call.1} parent=39 // pred_region
          %s2637 = smul.u32 2, %s19
          %s2639 = ssub.s32 1024, 1024
          %2640 = vsyncadd %s2630, %s2639
          %s2641 = smul.addr %s2637, 128
          %s2642 = scalar_lea.hbm %s5, %s2641
          %s2643 = sshll.u32 %s2633, 4
          %s2644 = int_to_ptr.vmem [resolvable:$true] %s2643
          %2649 = dma.vmem_to_hbm [thread:$0]  %s2644, 1024, %s2642, %s2630, 256, 512, 16
        $region44: #{tpu_custom_call.1} parent=39 // pred_fallthru
          _
      $region40: #{tpu_custom_call.1} parent=5 // pred_fallthru
        _
      %p2650 = scmp.le.s32.totalorder 2, %s14
      // Predicated region
      $region45: #{tpu_custom_call.1} parent=5 // pred_check
        %p2651 = pneg %p2650
      $region46: #{tpu_custom_call.1} parent=5 // pred_check_branch
        %2653 = sbr.rel (%p2651) target = $region48
      $region47: #{tpu_custom_call.1} parent=5 // pred_region
        %s2654 = ssub.s32 %s14, 2
        // Predicated region
        $region49: #{tpu_custom_call.1} parent=47 // pred_check
          %p2655 = pneg %p153
        $region50: #{tpu_custom_call.1} parent=47 // pred_check_branch
          %2657 = sbr.rel (%p2655) target = $region52
        $region51: #{tpu_custom_call.1} parent=47 // pred_region
          %s2658 = sand.u32 %s138, 1
          %s2659 = scalar_lea.sflag [#allocation3], %s2658
          %s2660 = sand.u32 %s138, 1
          %s2661 = smul.addr %s2660, 64
          %s2662 = scalar_lea.vmem [#allocation2], %s2661
          %2663 = dma.done %s2659, 1024
        $region52: #{tpu_custom_call.1} parent=47 // pred_fallthru
          _
      $region48: #{tpu_custom_call.1} parent=5 // pred_fallthru
        _
    $region6: #{tpu_custom_call.1} parent=1 // loop_footer
      %s18 = sadd.s32 1, %s14
    $region7: #{tpu_custom_call.1} parent=1 // loop_footer_branch
      %13 = sbr.rel target = $region3
    $region8: #{tpu_custom_call.1} parent=1 // loop_exit
      _
    %2664 = vsyncpa [#allocation3], 1
    %s2665 = scalar_lea.sflag [#allocation3], 1
    %2666 = vsyncpa %s2665, 1

</llo_original>
